<compile_context>
chip_gen: v7x
topology: tpu7x:2x2x1
jax: 0.10.0
libtpu: 0.0.40
codegen_flags: <defaults>
</compile_context>

<pallas_src>
import jax
import jax.numpy as jnp
from jax.experimental import pallas as pl
from jax.experimental.pallas import tpu as pltpu


def _bcast_mul_kernel(x_ref, s_ref, o_ref):
    # x_ref: (R, HW)  rows = (n, c) pairs on sublanes, spatial HW on lanes
    # s_ref: (R, 1)   one scale per row; broadcast along lanes by the VPU
    o_ref[...] = x_ref[...] * s_ref[...]


def broadcast_mul(x, scale, *, vmem_budget_bytes=8 << 20):
    """out = x * scale with x: [N, C, H, W], scale: [N, C, 1, 1]."""
    N, C, H, W = x.shape
    assert scale.shape == (N, C, 1, 1)
    NC, HW = N * C, H * W

    # Free, contiguous reshapes in native NCHW layout (no transposes).
    x2 = x.reshape(NC, HW)
    s2 = scale.reshape(NC, 1)

    # Estimate the lane/sublane-padded VMEM footprint (x + out + scale).
    itemsize = jnp.dtype(x.dtype).itemsize
    lane_pad = max(128, ((HW + 127) // 128) * 128)
    row_pad = ((NC + 7) // 8) * 8
    total_bytes = 3 * row_pad * lane_pad * itemsize

    if total_bytes <= vmem_budget_bytes:
        # Whole problem resident in VMEM: single step, no grid, no per-step
        # overhead.  Block shapes equal the full array dims, so the
        # (8, 128) divisibility rule is satisfied.
        out = pl.pallas_call(
            _bcast_mul_kernel,
            out_shape=jax.ShapeDtypeStruct((NC, HW), x.dtype),
            in_specs=[
                pl.BlockSpec((NC, HW), lambda: (0, 0)),
                pl.BlockSpec((NC, 1), lambda: (0, 0)),
            ],
            out_specs=pl.BlockSpec((NC, HW), lambda: (0, 0)),
        )(x2, s2)
    else:
        # Large-shape fallback: tile over independent (n, c) rows with
        # balanced, sublane-aligned tiles so auto-pipelining overlaps
        # DMA-in / multiply / DMA-out.
        tr = 1024
        while tr > 8 and 3 * tr * lane_pad * itemsize > vmem_budget_bytes:
            tr //= 2
        grid = (pl.cdiv(NC, tr),)
        out = pl.pallas_call(
            _bcast_mul_kernel,
            out_shape=jax.ShapeDtypeStruct((NC, HW), x.dtype),
            grid=grid,
            in_specs=[
                pl.BlockSpec((tr, HW), lambda i: (i, 0)),
                pl.BlockSpec((tr, 1), lambda i: (i, 0)),
            ],
            out_specs=pl.BlockSpec((tr, HW), lambda i: (i, 0)),
            compiler_params=pltpu.CompilerParams(
                dimension_semantics=("parallel",)
            ),
        )(x2, s2)

    return out.reshape(N, C, H, W)


if __name__ == "__main__":
    key = jax.random.PRNGKey(0)
    k1, k2 = jax.random.split(key)

    # Shapes from the module's forward: x374=[1,1632,7,7], x379=[1,1632,1,1]
    x374 = jax.random.normal(k1, (1, 1632, 7, 7), dtype=jnp.float32)
    x379 = jax.random.normal(k2, (1, 1632, 1, 1), dtype=jnp.float32)

    out = broadcast_mul(x374, x379)
    out = jax.block_until_ready(out)

    # correctness check against plain JAX broadcasting
    ref = x374 * x379
    assert out.shape == (1, 1632, 7, 7)
    assert jnp.allclose(out, ref, atol=1e-6, rtol=1e-6)

    print("KERNEL_OK")
</pallas_src>

<mosaic_0001>
module attributes {stable_mosaic.version = 11 : i64} {
  func.func @_bcast_mul_kernel(%arg0: memref<1632x49xf32, #tpu.memory_space<vmem>>, %arg1: memref<1632x1xf32, #tpu.memory_space<vmem>>, %arg2: memref<1632x49xf32, #tpu.memory_space<vmem>>) attributes {dimension_semantics = [], scalar_prefetch = 0 : i64, scratch_operands = 0 : i64, tpu.core_type = #tpu.core_type<tc>} {
    %c0 = arith.constant 0 : index
    %c0_0 = arith.constant 0 : index
    %0 = vector.load %arg0[%c0, %c0_0] : memref<1632x49xf32, #tpu.memory_space<vmem>>, vector<1632x49xf32>
    %c0_1 = arith.constant 0 : index
    %c0_2 = arith.constant 0 : index
    %1 = vector.load %arg1[%c0_1, %c0_2] : memref<1632x1xf32, #tpu.memory_space<vmem>>, vector<1632x1xf32>
    %2 = vector.broadcast %1 : vector<1632x1xf32> to vector<1632x49xf32>
    %3 = arith.mulf %0, %2 : vector<1632x49xf32>
    %c0_3 = arith.constant 0 : index
    %c0_4 = arith.constant 0 : index
    %4 = vector.load %arg2[%c0_3, %c0_4] : memref<1632x49xf32, #tpu.memory_space<vmem>>, vector<1632x49xf32>
    tpu.vector_store %arg2[%c0_3, %c0_4], %3 {strides = array<i32>} : memref<1632x49xf32, #tpu.memory_space<vmem>>, vector<1632x49xf32>,
    return
  }
}

</mosaic_0001>

<llo_original>
// kernel: tpu_custom_call.1
$region0: #{tpu_custom_call.1}
  #allocation0 [shape = 'u32[]', space=smem, size = 0x4, offset = 0x4, fixed_abs, tag = 'smem constant byte address 0x4 - core index']
  #allocation1 [shape = 'u32[144,128]{1,0:T(1,128)}', space=vmem, size = 0x12000, scoped, tag = 'internal scratch']
  %s0 = inlined_call_operand.vmem [shape: f32[1632,49], index: 0, kind: input, shape index: {}]
  %s1 = inlined_call_operand.vmem [shape: f32[1632,1], index: 1, kind: input, shape index: {}]
  %s2 = inlined_call_operand.vmem [shape: f32[1632,49], index: 2, kind: output, shape index: {}]
  %s3 = sld [smem:[#allocation0]]
  $region18: #{tpu_custom_call.1} parent=0
    _
  %s5 = ssub.s32 1, %s3
  %s6 = scalar_select 0, %s5, %s3
  // Predicated region
  $region2: #{tpu_custom_call.1} parent=0 // pred_check
    _
  $region3: #{tpu_custom_call.1} parent=0 // pred_check_branch
    %8 = sbr.rel (0) target = $region5
  $region4: #{tpu_custom_call.1} parent=0 // pred_region
    _
  $region5: #{tpu_custom_call.1} parent=0 // pred_fallthru
    _
  // Predicated region
  $region6: #{tpu_custom_call.1} parent=0 // pred_check
    _
  $region7: #{tpu_custom_call.1} parent=0 // pred_check_branch
    %10 = sbr.rel (0) target = $region9
  $region8: #{tpu_custom_call.1} parent=0 // pred_region
    _
  $region9: #{tpu_custom_call.1} parent=0 // pred_fallthru
    _
  %v11 = vld [vmem:[%s0] sm:$0xff]
  %v12 = vld [vmem:[%s0 + $0x8] sm:$0xff]
  %v13 = vld [vmem:[%s0 + $0x10] sm:$0xff]
  %v14 = vld [vmem:[%s0 + $0x18] sm:$0xff]
  %v15 = vld [vmem:[%s0 + $0x20] sm:$0xff]
  %v16 = vld [vmem:[%s0 + $0x28] sm:$0xff]
  %v17 = vld [vmem:[%s0 + $0x30] sm:$0xff]
  %v18 = vld [vmem:[%s0 + $0x38] sm:$0xff]
  %v19 = vld [vmem:[%s0 + $0x40] sm:$0xff]
  %v20 = vld [vmem:[%s0 + $0x48] sm:$0xff]
  %v21 = vld [vmem:[%s0 + $0x50] sm:$0xff]
  %v22 = vld [vmem:[%s0 + $0x58] sm:$0xff]
  %v23 = vld [vmem:[%s0 + $0x60] sm:$0xff]
  %v24 = vld [vmem:[%s0 + $0x68] sm:$0xff]
  %v25 = vld [vmem:[%s0 + $0x70] sm:$0xff]
  %v26 = vld [vmem:[%s0 + $0x78] sm:$0xff]
  %v27 = vld [vmem:[%s0 + $0x80] sm:$0xff]
  %v28 = vld [vmem:[%s0 + $0x88] sm:$0xff]
  %v29 = vld [vmem:[%s0 + $0x90] sm:$0xff]
  %v30 = vld [vmem:[%s0 + $0x98] sm:$0xff]
  %v31 = vld [vmem:[%s0 + $0xa0] sm:$0xff]
  %v32 = vld [vmem:[%s0 + $0xa8] sm:$0xff]
  %v33 = vld [vmem:[%s0 + $0xb0] sm:$0xff]
  %v34 = vld [vmem:[%s0 + $0xb8] sm:$0xff]
  %v35 = vld [vmem:[%s0 + $0xc0] sm:$0xff]
  %v36 = vld [vmem:[%s0 + $0xc8] sm:$0xff]
  %v37 = vld [vmem:[%s0 + $0xd0] sm:$0xff]
  %v38 = vld [vmem:[%s0 + $0xd8] sm:$0xff]
  %v39 = vld [vmem:[%s0 + $0xe0] sm:$0xff]
  %v40 = vld [vmem:[%s0 + $0xe8] sm:$0xff]
  %v41 = vld [vmem:[%s0 + $0xf0] sm:$0xff]
  %v42 = vld [vmem:[%s0 + $0xf8] sm:$0xff]
  %v43 = vld [vmem:[%s0 + $0x100] sm:$0xff]
  %v44 = vld [vmem:[%s0 + $0x108] sm:$0xff]
  %v45 = vld [vmem:[%s0 + $0x110] sm:$0xff]
  %v46 = vld [vmem:[%s0 + $0x118] sm:$0xff]
  %v47 = vld [vmem:[%s0 + $0x120] sm:$0xff]
  %v48 = vld [vmem:[%s0 + $0x128] sm:$0xff]
  %v49 = vld [vmem:[%s0 + $0x130] sm:$0xff]
  %v50 = vld [vmem:[%s0 + $0x138] sm:$0xff]
  %v51 = vld [vmem:[%s0 + $0x140] sm:$0xff]
  %v52 = vld [vmem:[%s0 + $0x148] sm:$0xff]
  %v53 = vld [vmem:[%s0 + $0x150] sm:$0xff]
  %v54 = vld [vmem:[%s0 + $0x158] sm:$0xff]
  %v55 = vld [vmem:[%s0 + $0x160] sm:$0xff]
  %v56 = vld [vmem:[%s0 + $0x168] sm:$0xff]
  %v57 = vld [vmem:[%s0 + $0x170] sm:$0xff]
  %v58 = vld [vmem:[%s0 + $0x178] sm:$0xff]
  %v59 = vld [vmem:[%s0 + $0x180] sm:$0xff]
  %v60 = vld [vmem:[%s0 + $0x188] sm:$0xff]
  %v61 = vld [vmem:[%s0 + $0x190] sm:$0xff]
  %v62 = vld [vmem:[%s0 + $0x198] sm:$0xff]
  %v63 = vld [vmem:[%s0 + $0x1a0] sm:$0xff]
  %v64 = vld [vmem:[%s0 + $0x1a8] sm:$0xff]
  %v65 = vld [vmem:[%s0 + $0x1b0] sm:$0xff]
  %v66 = vld [vmem:[%s0 + $0x1b8] sm:$0xff]
  %v67 = vld [vmem:[%s0 + $0x1c0] sm:$0xff]
  %v68 = vld [vmem:[%s0 + $0x1c8] sm:$0xff]
  %v69 = vld [vmem:[%s0 + $0x1d0] sm:$0xff]
  %v70 = vld [vmem:[%s0 + $0x1d8] sm:$0xff]
  %v71 = vld [vmem:[%s0 + $0x1e0] sm:$0xff]
  %v72 = vld [vmem:[%s0 + $0x1e8] sm:$0xff]
  %v73 = vld [vmem:[%s0 + $0x1f0] sm:$0xff]
  %v74 = vld [vmem:[%s0 + $0x1f8] sm:$0xff]
  %v75 = vld [vmem:[%s0 + $0x200] sm:$0xff]
  %v76 = vld [vmem:[%s0 + $0x208] sm:$0xff]
  %v77 = vld [vmem:[%s0 + $0x210] sm:$0xff]
  %v78 = vld [vmem:[%s0 + $0x218] sm:$0xff]
  %v79 = vld [vmem:[%s0 + $0x220] sm:$0xff]
  %v80 = vld [vmem:[%s0 + $0x228] sm:$0xff]
  %v81 = vld [vmem:[%s0 + $0x230] sm:$0xff]
  %v82 = vld [vmem:[%s0 + $0x238] sm:$0xff]
  %v83 = vld [vmem:[%s0 + $0x240] sm:$0xff]
  %v84 = vld [vmem:[%s0 + $0x248] sm:$0xff]
  %v85 = vld [vmem:[%s0 + $0x250] sm:$0xff]
  %v86 = vld [vmem:[%s0 + $0x258] sm:$0xff]
  %v87 = vld [vmem:[%s0 + $0x260] sm:$0xff]
  %v88 = vld [vmem:[%s0 + $0x268] sm:$0xff]
  %v89 = vld [vmem:[%s0 + $0x270] sm:$0xff]
  %v90 = vld [vmem:[%s0 + $0x278] sm:$0xff]
  %v91 = vld [vmem:[%s0 + $0x280] sm:$0xff]
  %v92 = vld [vmem:[%s0 + $0x288] sm:$0xff]
  %v93 = vld [vmem:[%s0 + $0x290] sm:$0xff]
  %v94 = vld [vmem:[%s0 + $0x298] sm:$0xff]
  %v95 = vld [vmem:[%s0 + $0x2a0] sm:$0xff]
  %v96 = vld [vmem:[%s0 + $0x2a8] sm:$0xff]
  %v97 = vld [vmem:[%s0 + $0x2b0] sm:$0xff]
  %v98 = vld [vmem:[%s0 + $0x2b8] sm:$0xff]
  %v99 = vld [vmem:[%s0 + $0x2c0] sm:$0xff]
  %v100 = vld [vmem:[%s0 + $0x2c8] sm:$0xff]
  %v101 = vld [vmem:[%s0 + $0x2d0] sm:$0xff]
  %v102 = vld [vmem:[%s0 + $0x2d8] sm:$0xff]
  %v103 = vld [vmem:[%s0 + $0x2e0] sm:$0xff]
  %v104 = vld [vmem:[%s0 + $0x2e8] sm:$0xff]
  %v105 = vld [vmem:[%s0 + $0x2f0] sm:$0xff]
  %v106 = vld [vmem:[%s0 + $0x2f8] sm:$0xff]
  %v107 = vld [vmem:[%s0 + $0x300] sm:$0xff]
  %v108 = vld [vmem:[%s0 + $0x308] sm:$0xff]
  %v109 = vld [vmem:[%s0 + $0x310] sm:$0xff]
  %v110 = vld [vmem:[%s0 + $0x318] sm:$0xff]
  %v111 = vld [vmem:[%s0 + $0x320] sm:$0xff]
  %v112 = vld [vmem:[%s0 + $0x328] sm:$0xff]
  %v113 = vld [vmem:[%s0 + $0x330] sm:$0xff]
  %v114 = vld [vmem:[%s0 + $0x338] sm:$0xff]
  %v115 = vld [vmem:[%s0 + $0x340] sm:$0xff]
  %v116 = vld [vmem:[%s0 + $0x348] sm:$0xff]
  %v117 = vld [vmem:[%s0 + $0x350] sm:$0xff]
  %v118 = vld [vmem:[%s0 + $0x358] sm:$0xff]
  %v119 = vld [vmem:[%s0 + $0x360] sm:$0xff]
  %v120 = vld [vmem:[%s0 + $0x368] sm:$0xff]
  %v121 = vld [vmem:[%s0 + $0x370] sm:$0xff]
  %v122 = vld [vmem:[%s0 + $0x378] sm:$0xff]
  %v123 = vld [vmem:[%s0 + $0x380] sm:$0xff]
  %v124 = vld [vmem:[%s0 + $0x388] sm:$0xff]
  %v125 = vld [vmem:[%s0 + $0x390] sm:$0xff]
  %v126 = vld [vmem:[%s0 + $0x398] sm:$0xff]
  %v127 = vld [vmem:[%s0 + $0x3a0] sm:$0xff]
  %v128 = vld [vmem:[%s0 + $0x3a8] sm:$0xff]
  %v129 = vld [vmem:[%s0 + $0x3b0] sm:$0xff]
  %v130 = vld [vmem:[%s0 + $0x3b8] sm:$0xff]
  %v131 = vld [vmem:[%s0 + $0x3c0] sm:$0xff]
  %v132 = vld [vmem:[%s0 + $0x3c8] sm:$0xff]
  %v133 = vld [vmem:[%s0 + $0x3d0] sm:$0xff]
  %v134 = vld [vmem:[%s0 + $0x3d8] sm:$0xff]
  %v135 = vld [vmem:[%s0 + $0x3e0] sm:$0xff]
  %v136 = vld [vmem:[%s0 + $0x3e8] sm:$0xff]
  %v137 = vld [vmem:[%s0 + $0x3f0] sm:$0xff]
  %v138 = vld [vmem:[%s0 + $0x3f8] sm:$0xff]
  %v139 = vld [vmem:[%s0 + $0x400] sm:$0xff]
  %v140 = vld [vmem:[%s0 + $0x408] sm:$0xff]
  %v141 = vld [vmem:[%s0 + $0x410] sm:$0xff]
  %v142 = vld [vmem:[%s0 + $0x418] sm:$0xff]
  %v143 = vld [vmem:[%s0 + $0x420] sm:$0xff]
  %v144 = vld [vmem:[%s0 + $0x428] sm:$0xff]
  %v145 = vld [vmem:[%s0 + $0x430] sm:$0xff]
  %v146 = vld [vmem:[%s0 + $0x438] sm:$0xff]
  %v147 = vld [vmem:[%s0 + $0x440] sm:$0xff]
  %v148 = vld [vmem:[%s0 + $0x448] sm:$0xff]
  %v149 = vld [vmem:[%s0 + $0x450] sm:$0xff]
  %v150 = vld [vmem:[%s0 + $0x458] sm:$0xff]
  %v151 = vld [vmem:[%s0 + $0x460] sm:$0xff]
  %v152 = vld [vmem:[%s0 + $0x468] sm:$0xff]
  %v153 = vld [vmem:[%s0 + $0x470] sm:$0xff]
  %v154 = vld [vmem:[%s0 + $0x478] sm:$0xff]
  %v155 = vld [vmem:[%s0 + $0x480] sm:$0xff]
  %v156 = vld [vmem:[%s0 + $0x488] sm:$0xff]
  %v157 = vld [vmem:[%s0 + $0x490] sm:$0xff]
  %v158 = vld [vmem:[%s0 + $0x498] sm:$0xff]
  %v159 = vld [vmem:[%s0 + $0x4a0] sm:$0xff]
  %v160 = vld [vmem:[%s0 + $0x4a8] sm:$0xff]
  %v161 = vld [vmem:[%s0 + $0x4b0] sm:$0xff]
  %v162 = vld [vmem:[%s0 + $0x4b8] sm:$0xff]
  %v163 = vld [vmem:[%s0 + $0x4c0] sm:$0xff]
  %v164 = vld [vmem:[%s0 + $0x4c8] sm:$0xff]
  %v165 = vld [vmem:[%s0 + $0x4d0] sm:$0xff]
  %v166 = vld [vmem:[%s0 + $0x4d8] sm:$0xff]
  %v167 = vld [vmem:[%s0 + $0x4e0] sm:$0xff]
  %v168 = vld [vmem:[%s0 + $0x4e8] sm:$0xff]
  %v169 = vld [vmem:[%s0 + $0x4f0] sm:$0xff]
  %v170 = vld [vmem:[%s0 + $0x4f8] sm:$0xff]
  %v171 = vld [vmem:[%s0 + $0x500] sm:$0xff]
  %v172 = vld [vmem:[%s0 + $0x508] sm:$0xff]
  %v173 = vld [vmem:[%s0 + $0x510] sm:$0xff]
  %v174 = vld [vmem:[%s0 + $0x518] sm:$0xff]
  %v175 = vld [vmem:[%s0 + $0x520] sm:$0xff]
  %v176 = vld [vmem:[%s0 + $0x528] sm:$0xff]
  %v177 = vld [vmem:[%s0 + $0x530] sm:$0xff]
  %v178 = vld [vmem:[%s0 + $0x538] sm:$0xff]
  %v179 = vld [vmem:[%s0 + $0x540] sm:$0xff]
  %v180 = vld [vmem:[%s0 + $0x548] sm:$0xff]
  %v181 = vld [vmem:[%s0 + $0x550] sm:$0xff]
  %v182 = vld [vmem:[%s0 + $0x558] sm:$0xff]
  %v183 = vld [vmem:[%s0 + $0x560] sm:$0xff]
  %v184 = vld [vmem:[%s0 + $0x568] sm:$0xff]
  %v185 = vld [vmem:[%s0 + $0x570] sm:$0xff]
  %v186 = vld [vmem:[%s0 + $0x578] sm:$0xff]
  %v187 = vld [vmem:[%s0 + $0x580] sm:$0xff]
  %v188 = vld [vmem:[%s0 + $0x588] sm:$0xff]
  %v189 = vld [vmem:[%s0 + $0x590] sm:$0xff]
  %v190 = vld [vmem:[%s0 + $0x598] sm:$0xff]
  %v191 = vld [vmem:[%s0 + $0x5a0] sm:$0xff]
  %v192 = vld [vmem:[%s0 + $0x5a8] sm:$0xff]
  %v193 = vld [vmem:[%s0 + $0x5b0] sm:$0xff]
  %v194 = vld [vmem:[%s0 + $0x5b8] sm:$0xff]
  %v195 = vld [vmem:[%s0 + $0x5c0] sm:$0xff]
  %v196 = vld [vmem:[%s0 + $0x5c8] sm:$0xff]
  %v197 = vld [vmem:[%s0 + $0x5d0] sm:$0xff]
  %v198 = vld [vmem:[%s0 + $0x5d8] sm:$0xff]
  %v199 = vld [vmem:[%s0 + $0x5e0] sm:$0xff]
  %v200 = vld [vmem:[%s0 + $0x5e8] sm:$0xff]
  %v201 = vld [vmem:[%s0 + $0x5f0] sm:$0xff]
  %v202 = vld [vmem:[%s0 + $0x5f8] sm:$0xff]
  %v203 = vld [vmem:[%s0 + $0x600] sm:$0xff]
  %v204 = vld [vmem:[%s0 + $0x608] sm:$0xff]
  %v205 = vld [vmem:[%s0 + $0x610] sm:$0xff]
  %v206 = vld [vmem:[%s0 + $0x618] sm:$0xff]
  %v207 = vld [vmem:[%s0 + $0x620] sm:$0xff]
  %v208 = vld [vmem:[%s0 + $0x628] sm:$0xff]
  %v209 = vld [vmem:[%s0 + $0x630] sm:$0xff]
  %v210 = vld [vmem:[%s0 + $0x638] sm:$0xff]
  %v211 = vld [vmem:[%s0 + $0x640] sm:$0xff]
  %v212 = vld [vmem:[%s0 + $0x648] sm:$0xff]
  %v213 = vld [vmem:[%s0 + $0x650] sm:$0xff]
  %v214 = vld [vmem:[%s0 + $0x658] sm:$0xff]
  %v215 = vld [vmem:[%s1] sm:$0xff]
  %v216 = vld [vmem:[%s1 + $0x8] sm:$0xff]
  %v217 = vld [vmem:[%s1 + $0x10] sm:$0xff]
  %v218 = vld [vmem:[%s1 + $0x18] sm:$0xff]
  %v219 = vld [vmem:[%s1 + $0x20] sm:$0xff]
  %v220 = vld [vmem:[%s1 + $0x28] sm:$0xff]
  %v221 = vld [vmem:[%s1 + $0x30] sm:$0xff]
  %v222 = vld [vmem:[%s1 + $0x38] sm:$0xff]
  %v223 = vld [vmem:[%s1 + $0x40] sm:$0xff]
  %v224 = vld [vmem:[%s1 + $0x48] sm:$0xff]
  %v225 = vld [vmem:[%s1 + $0x50] sm:$0xff]
  %v226 = vld [vmem:[%s1 + $0x58] sm:$0xff]
  %v227 = vld [vmem:[%s1 + $0x60] sm:$0xff]
  %v228 = vld [vmem:[%s1 + $0x68] sm:$0xff]
  %v229 = vld [vmem:[%s1 + $0x70] sm:$0xff]
  %v230 = vld [vmem:[%s1 + $0x78] sm:$0xff]
  %v231 = vld [vmem:[%s1 + $0x80] sm:$0xff]
  %v232 = vld [vmem:[%s1 + $0x88] sm:$0xff]
  %v233 = vld [vmem:[%s1 + $0x90] sm:$0xff]
  %v234 = vld [vmem:[%s1 + $0x98] sm:$0xff]
  %v235 = vld [vmem:[%s1 + $0xa0] sm:$0xff]
  %v236 = vld [vmem:[%s1 + $0xa8] sm:$0xff]
  %v237 = vld [vmem:[%s1 + $0xb0] sm:$0xff]
  %v238 = vld [vmem:[%s1 + $0xb8] sm:$0xff]
  %v239 = vld [vmem:[%s1 + $0xc0] sm:$0xff]
  %v240 = vld [vmem:[%s1 + $0xc8] sm:$0xff]
  %v241 = vld [vmem:[%s1 + $0xd0] sm:$0xff]
  %v242 = vld [vmem:[%s1 + $0xd8] sm:$0xff]
  %v243 = vld [vmem:[%s1 + $0xe0] sm:$0xff]
  %v244 = vld [vmem:[%s1 + $0xe8] sm:$0xff]
  %v245 = vld [vmem:[%s1 + $0xf0] sm:$0xff]
  %v246 = vld [vmem:[%s1 + $0xf8] sm:$0xff]
  %v247 = vld [vmem:[%s1 + $0x100] sm:$0xff]
  %v248 = vld [vmem:[%s1 + $0x108] sm:$0xff]
  %v249 = vld [vmem:[%s1 + $0x110] sm:$0xff]
  %v250 = vld [vmem:[%s1 + $0x118] sm:$0xff]
  %v251 = vld [vmem:[%s1 + $0x120] sm:$0xff]
  %v252 = vld [vmem:[%s1 + $0x128] sm:$0xff]
  %v253 = vld [vmem:[%s1 + $0x130] sm:$0xff]
  %v254 = vld [vmem:[%s1 + $0x138] sm:$0xff]
  %v255 = vld [vmem:[%s1 + $0x140] sm:$0xff]
  %v256 = vld [vmem:[%s1 + $0x148] sm:$0xff]
  %v257 = vld [vmem:[%s1 + $0x150] sm:$0xff]
  %v258 = vld [vmem:[%s1 + $0x158] sm:$0xff]
  %v259 = vld [vmem:[%s1 + $0x160] sm:$0xff]
  %v260 = vld [vmem:[%s1 + $0x168] sm:$0xff]
  %v261 = vld [vmem:[%s1 + $0x170] sm:$0xff]
  %v262 = vld [vmem:[%s1 + $0x178] sm:$0xff]
  %v263 = vld [vmem:[%s1 + $0x180] sm:$0xff]
  %v264 = vld [vmem:[%s1 + $0x188] sm:$0xff]
  %v265 = vld [vmem:[%s1 + $0x190] sm:$0xff]
  %v266 = vld [vmem:[%s1 + $0x198] sm:$0xff]
  %v267 = vld [vmem:[%s1 + $0x1a0] sm:$0xff]
  %v268 = vld [vmem:[%s1 + $0x1a8] sm:$0xff]
  %v269 = vld [vmem:[%s1 + $0x1b0] sm:$0xff]
  %v270 = vld [vmem:[%s1 + $0x1b8] sm:$0xff]
  %v271 = vld [vmem:[%s1 + $0x1c0] sm:$0xff]
  %v272 = vld [vmem:[%s1 + $0x1c8] sm:$0xff]
  %v273 = vld [vmem:[%s1 + $0x1d0] sm:$0xff]
  %v274 = vld [vmem:[%s1 + $0x1d8] sm:$0xff]
  %v275 = vld [vmem:[%s1 + $0x1e0] sm:$0xff]
  %v276 = vld [vmem:[%s1 + $0x1e8] sm:$0xff]
  %v277 = vld [vmem:[%s1 + $0x1f0] sm:$0xff]
  %v278 = vld [vmem:[%s1 + $0x1f8] sm:$0xff]
  %v279 = vld [vmem:[%s1 + $0x200] sm:$0xff]
  %v280 = vld [vmem:[%s1 + $0x208] sm:$0xff]
  %v281 = vld [vmem:[%s1 + $0x210] sm:$0xff]
  %v282 = vld [vmem:[%s1 + $0x218] sm:$0xff]
  %v283 = vld [vmem:[%s1 + $0x220] sm:$0xff]
  %v284 = vld [vmem:[%s1 + $0x228] sm:$0xff]
  %v285 = vld [vmem:[%s1 + $0x230] sm:$0xff]
  %v286 = vld [vmem:[%s1 + $0x238] sm:$0xff]
  %v287 = vld [vmem:[%s1 + $0x240] sm:$0xff]
  %v288 = vld [vmem:[%s1 + $0x248] sm:$0xff]
  %v289 = vld [vmem:[%s1 + $0x250] sm:$0xff]
  %v290 = vld [vmem:[%s1 + $0x258] sm:$0xff]
  %v291 = vld [vmem:[%s1 + $0x260] sm:$0xff]
  %v292 = vld [vmem:[%s1 + $0x268] sm:$0xff]
  %v293 = vld [vmem:[%s1 + $0x270] sm:$0xff]
  %v294 = vld [vmem:[%s1 + $0x278] sm:$0xff]
  %v295 = vld [vmem:[%s1 + $0x280] sm:$0xff]
  %v296 = vld [vmem:[%s1 + $0x288] sm:$0xff]
  %v297 = vld [vmem:[%s1 + $0x290] sm:$0xff]
  %v298 = vld [vmem:[%s1 + $0x298] sm:$0xff]
  %v299 = vld [vmem:[%s1 + $0x2a0] sm:$0xff]
  %v300 = vld [vmem:[%s1 + $0x2a8] sm:$0xff]
  %v301 = vld [vmem:[%s1 + $0x2b0] sm:$0xff]
  %v302 = vld [vmem:[%s1 + $0x2b8] sm:$0xff]
  %v303 = vld [vmem:[%s1 + $0x2c0] sm:$0xff]
  %v304 = vld [vmem:[%s1 + $0x2c8] sm:$0xff]
  %v305 = vld [vmem:[%s1 + $0x2d0] sm:$0xff]
  %v306 = vld [vmem:[%s1 + $0x2d8] sm:$0xff]
  %v307 = vld [vmem:[%s1 + $0x2e0] sm:$0xff]
  %v308 = vld [vmem:[%s1 + $0x2e8] sm:$0xff]
  %v309 = vld [vmem:[%s1 + $0x2f0] sm:$0xff]
  %v310 = vld [vmem:[%s1 + $0x2f8] sm:$0xff]
  %v311 = vld [vmem:[%s1 + $0x300] sm:$0xff]
  %v312 = vld [vmem:[%s1 + $0x308] sm:$0xff]
  %v313 = vld [vmem:[%s1 + $0x310] sm:$0xff]
  %v314 = vld [vmem:[%s1 + $0x318] sm:$0xff]
  %v315 = vld [vmem:[%s1 + $0x320] sm:$0xff]
  %v316 = vld [vmem:[%s1 + $0x328] sm:$0xff]
  %v317 = vld [vmem:[%s1 + $0x330] sm:$0xff]
  %v318 = vld [vmem:[%s1 + $0x338] sm:$0xff]
  %v319 = vld [vmem:[%s1 + $0x340] sm:$0xff]
  %v320 = vld [vmem:[%s1 + $0x348] sm:$0xff]
  %v321 = vld [vmem:[%s1 + $0x350] sm:$0xff]
  %v322 = vld [vmem:[%s1 + $0x358] sm:$0xff]
  %v323 = vld [vmem:[%s1 + $0x360] sm:$0xff]
  %v324 = vld [vmem:[%s1 + $0x368] sm:$0xff]
  %v325 = vld [vmem:[%s1 + $0x370] sm:$0xff]
  %v326 = vld [vmem:[%s1 + $0x378] sm:$0xff]
  %v327 = vld [vmem:[%s1 + $0x380] sm:$0xff]
  %v328 = vld [vmem:[%s1 + $0x388] sm:$0xff]
  %v329 = vld [vmem:[%s1 + $0x390] sm:$0xff]
  %v330 = vld [vmem:[%s1 + $0x398] sm:$0xff]
  %v331 = vld [vmem:[%s1 + $0x3a0] sm:$0xff]
  %v332 = vld [vmem:[%s1 + $0x3a8] sm:$0xff]
  %v333 = vld [vmem:[%s1 + $0x3b0] sm:$0xff]
  %v334 = vld [vmem:[%s1 + $0x3b8] sm:$0xff]
  %v335 = vld [vmem:[%s1 + $0x3c0] sm:$0xff]
  %v336 = vld [vmem:[%s1 + $0x3c8] sm:$0xff]
  %v337 = vld [vmem:[%s1 + $0x3d0] sm:$0xff]
  %v338 = vld [vmem:[%s1 + $0x3d8] sm:$0xff]
  %v339 = vld [vmem:[%s1 + $0x3e0] sm:$0xff]
  %v340 = vld [vmem:[%s1 + $0x3e8] sm:$0xff]
  %v341 = vld [vmem:[%s1 + $0x3f0] sm:$0xff]
  %v342 = vld [vmem:[%s1 + $0x3f8] sm:$0xff]
  %v343 = vld [vmem:[%s1 + $0x400] sm:$0xff]
  %v344 = vld [vmem:[%s1 + $0x408] sm:$0xff]
  %v345 = vld [vmem:[%s1 + $0x410] sm:$0xff]
  %v346 = vld [vmem:[%s1 + $0x418] sm:$0xff]
  %v347 = vld [vmem:[%s1 + $0x420] sm:$0xff]
  %v348 = vld [vmem:[%s1 + $0x428] sm:$0xff]
  %v349 = vld [vmem:[%s1 + $0x430] sm:$0xff]
  %v350 = vld [vmem:[%s1 + $0x438] sm:$0xff]
  %v351 = vld [vmem:[%s1 + $0x440] sm:$0xff]
  %v352 = vld [vmem:[%s1 + $0x448] sm:$0xff]
  %v353 = vld [vmem:[%s1 + $0x450] sm:$0xff]
  %v354 = vld [vmem:[%s1 + $0x458] sm:$0xff]
  %v355 = vld [vmem:[%s1 + $0x460] sm:$0xff]
  %v356 = vld [vmem:[%s1 + $0x468] sm:$0xff]
  %v357 = vld [vmem:[%s1 + $0x470] sm:$0xff]
  %v358 = vld [vmem:[%s1 + $0x478] sm:$0xff]
  %v359 = vld [vmem:[%s1 + $0x480] sm:$0xff]
  %v360 = vld [vmem:[%s1 + $0x488] sm:$0xff]
  %v361 = vld [vmem:[%s1 + $0x490] sm:$0xff]
  %v362 = vld [vmem:[%s1 + $0x498] sm:$0xff]
  %v363 = vld [vmem:[%s1 + $0x4a0] sm:$0xff]
  %v364 = vld [vmem:[%s1 + $0x4a8] sm:$0xff]
  %v365 = vld [vmem:[%s1 + $0x4b0] sm:$0xff]
  %v366 = vld [vmem:[%s1 + $0x4b8] sm:$0xff]
  %v367 = vld [vmem:[%s1 + $0x4c0] sm:$0xff]
  %v368 = vld [vmem:[%s1 + $0x4c8] sm:$0xff]
  %v369 = vld [vmem:[%s1 + $0x4d0] sm:$0xff]
  %v370 = vld [vmem:[%s1 + $0x4d8] sm:$0xff]
  %v371 = vld [vmem:[%s1 + $0x4e0] sm:$0xff]
  %v372 = vld [vmem:[%s1 + $0x4e8] sm:$0xff]
  %v373 = vld [vmem:[%s1 + $0x4f0] sm:$0xff]
  %v374 = vld [vmem:[%s1 + $0x4f8] sm:$0xff]
  %v375 = vld [vmem:[%s1 + $0x500] sm:$0xff]
  %v376 = vld [vmem:[%s1 + $0x508] sm:$0xff]
  %v377 = vld [vmem:[%s1 + $0x510] sm:$0xff]
  %v378 = vld [vmem:[%s1 + $0x518] sm:$0xff]
  %v379 = vld [vmem:[%s1 + $0x520] sm:$0xff]
  %v380 = vld [vmem:[%s1 + $0x528] sm:$0xff]
  %v381 = vld [vmem:[%s1 + $0x530] sm:$0xff]
  %v382 = vld [vmem:[%s1 + $0x538] sm:$0xff]
  %v383 = vld [vmem:[%s1 + $0x540] sm:$0xff]
  %v384 = vld [vmem:[%s1 + $0x548] sm:$0xff]
  %v385 = vld [vmem:[%s1 + $0x550] sm:$0xff]
  %v386 = vld [vmem:[%s1 + $0x558] sm:$0xff]
  %v387 = vld [vmem:[%s1 + $0x560] sm:$0xff]
  %v388 = vld [vmem:[%s1 + $0x568] sm:$0xff]
  %v389 = vld [vmem:[%s1 + $0x570] sm:$0xff]
  %v390 = vld [vmem:[%s1 + $0x578] sm:$0xff]
  %v391 = vld [vmem:[%s1 + $0x580] sm:$0xff]
  %v392 = vld [vmem:[%s1 + $0x588] sm:$0xff]
  %v393 = vld [vmem:[%s1 + $0x590] sm:$0xff]
  %v394 = vld [vmem:[%s1 + $0x598] sm:$0xff]
  %v395 = vld [vmem:[%s1 + $0x5a0] sm:$0xff]
  %v396 = vld [vmem:[%s1 + $0x5a8] sm:$0xff]
  %v397 = vld [vmem:[%s1 + $0x5b0] sm:$0xff]
  %v398 = vld [vmem:[%s1 + $0x5b8] sm:$0xff]
  %v399 = vld [vmem:[%s1 + $0x5c0] sm:$0xff]
  %v400 = vld [vmem:[%s1 + $0x5c8] sm:$0xff]
  %v401 = vld [vmem:[%s1 + $0x5d0] sm:$0xff]
  %v402 = vld [vmem:[%s1 + $0x5d8] sm:$0xff]
  %v403 = vld [vmem:[%s1 + $0x5e0] sm:$0xff]
  %v404 = vld [vmem:[%s1 + $0x5e8] sm:$0xff]
  %v405 = vld [vmem:[%s1 + $0x5f0] sm:$0xff]
  %v406 = vld [vmem:[%s1 + $0x5f8] sm:$0xff]
  %v407 = vld [vmem:[%s1 + $0x600] sm:$0xff]
  %v408 = vld [vmem:[%s1 + $0x608] sm:$0xff]
  %v409 = vld [vmem:[%s1 + $0x610] sm:$0xff]
  %v410 = vld [vmem:[%s1 + $0x618] sm:$0xff]
  %v411 = vld [vmem:[%s1 + $0x620] sm:$0xff]
  %v412 = vld [vmem:[%s1 + $0x628] sm:$0xff]
  %v413 = vld [vmem:[%s1 + $0x630] sm:$0xff]
  %v414 = vld [vmem:[%s1 + $0x638] sm:$0xff]
  %v415 = vld [vmem:[%s1 + $0x640] sm:$0xff]
  %v416 = vld [vmem:[%s1 + $0x648] sm:$0xff]
  %v417 = vld [vmem:[%s1 + $0x650] sm:$0xff]
  %v418 = vld [vmem:[%s1 + $0x658] sm:$0xff]
  %420 = vset.pattern.permute.xlu0 0
  %421 = vperm.xlu0 %420, %v215
  %v422 = vpop.permute.xlu0 %421
  %425 = vset.pattern.permute.xlu0 0
  %426 = vperm.xlu0 %425, %v216
  %v427 = vpop.permute.xlu0 %426
  %430 = vset.pattern.permute.xlu0 0
  %431 = vperm.xlu0 %430, %v217
  %v432 = vpop.permute.xlu0 %431
  %435 = vset.pattern.permute.xlu0 0
  %436 = vperm.xlu0 %435, %v218
  %v437 = vpop.permute.xlu0 %436
  %440 = vset.pattern.permute.xlu0 0
  %441 = vperm.xlu0 %440, %v219
  %v442 = vpop.permute.xlu0 %441
  %445 = vset.pattern.permute.xlu0 0
  %446 = vperm.xlu0 %445, %v220
  %v447 = vpop.permute.xlu0 %446
  %450 = vset.pattern.permute.xlu0 0
  %451 = vperm.xlu0 %450, %v221
  %v452 = vpop.permute.xlu0 %451
  %455 = vset.pattern.permute.xlu0 0
  %456 = vperm.xlu0 %455, %v222
  %v457 = vpop.permute.xlu0 %456
  %460 = vset.pattern.permute.xlu0 0
  %461 = vperm.xlu0 %460, %v223
  %v462 = vpop.permute.xlu0 %461
  %465 = vset.pattern.permute.xlu0 0
  %466 = vperm.xlu0 %465, %v224
  %v467 = vpop.permute.xlu0 %466
  %470 = vset.pattern.permute.xlu0 0
  %471 = vperm.xlu0 %470, %v225
  %v472 = vpop.permute.xlu0 %471
  %475 = vset.pattern.permute.xlu0 0
  %476 = vperm.xlu0 %475, %v226
  %v477 = vpop.permute.xlu0 %476
  %480 = vset.pattern.permute.xlu0 0
  %481 = vperm.xlu0 %480, %v227
  %v482 = vpop.permute.xlu0 %481
  %485 = vset.pattern.permute.xlu0 0
  %486 = vperm.xlu0 %485, %v228
  %v487 = vpop.permute.xlu0 %486
  %490 = vset.pattern.permute.xlu0 0
  %491 = vperm.xlu0 %490, %v229
  %v492 = vpop.permute.xlu0 %491
  %495 = vset.pattern.permute.xlu0 0
  %496 = vperm.xlu0 %495, %v230
  %v497 = vpop.permute.xlu0 %496
  %500 = vset.pattern.permute.xlu0 0
  %501 = vperm.xlu0 %500, %v231
  %v502 = vpop.permute.xlu0 %501
  %505 = vset.pattern.permute.xlu0 0
  %506 = vperm.xlu0 %505, %v232
  %v507 = vpop.permute.xlu0 %506
  %510 = vset.pattern.permute.xlu0 0
  %511 = vperm.xlu0 %510, %v233
  %v512 = vpop.permute.xlu0 %511
  %515 = vset.pattern.permute.xlu0 0
  %516 = vperm.xlu0 %515, %v234
  %v517 = vpop.permute.xlu0 %516
  %520 = vset.pattern.permute.xlu0 0
  %521 = vperm.xlu0 %520, %v235
  %v522 = vpop.permute.xlu0 %521
  %525 = vset.pattern.permute.xlu0 0
  %526 = vperm.xlu0 %525, %v236
  %v527 = vpop.permute.xlu0 %526
  %530 = vset.pattern.permute.xlu0 0
  %531 = vperm.xlu0 %530, %v237
  %v532 = vpop.permute.xlu0 %531
  %535 = vset.pattern.permute.xlu0 0
  %536 = vperm.xlu0 %535, %v238
  %v537 = vpop.permute.xlu0 %536
  %540 = vset.pattern.permute.xlu0 0
  %541 = vperm.xlu0 %540, %v239
  %v542 = vpop.permute.xlu0 %541
  %545 = vset.pattern.permute.xlu0 0
  %546 = vperm.xlu0 %545, %v240
  %v547 = vpop.permute.xlu0 %546
  %550 = vset.pattern.permute.xlu0 0
  %551 = vperm.xlu0 %550, %v241
  %v552 = vpop.permute.xlu0 %551
  %555 = vset.pattern.permute.xlu0 0
  %556 = vperm.xlu0 %555, %v242
  %v557 = vpop.permute.xlu0 %556
  %560 = vset.pattern.permute.xlu0 0
  %561 = vperm.xlu0 %560, %v243
  %v562 = vpop.permute.xlu0 %561
  %565 = vset.pattern.permute.xlu0 0
  %566 = vperm.xlu0 %565, %v244
  %v567 = vpop.permute.xlu0 %566
  %570 = vset.pattern.permute.xlu0 0
  %571 = vperm.xlu0 %570, %v245
  %v572 = vpop.permute.xlu0 %571
  %575 = vset.pattern.permute.xlu0 0
  %576 = vperm.xlu0 %575, %v246
  %v577 = vpop.permute.xlu0 %576
  %580 = vset.pattern.permute.xlu0 0
  %581 = vperm.xlu0 %580, %v247
  %v582 = vpop.permute.xlu0 %581
  %585 = vset.pattern.permute.xlu0 0
  %586 = vperm.xlu0 %585, %v248
  %v587 = vpop.permute.xlu0 %586
  %590 = vset.pattern.permute.xlu0 0
  %591 = vperm.xlu0 %590, %v249
  %v592 = vpop.permute.xlu0 %591
  %595 = vset.pattern.permute.xlu0 0
  %596 = vperm.xlu0 %595, %v250
  %v597 = vpop.permute.xlu0 %596
  %600 = vset.pattern.permute.xlu0 0
  %601 = vperm.xlu0 %600, %v251
  %v602 = vpop.permute.xlu0 %601
  %605 = vset.pattern.permute.xlu0 0
  %606 = vperm.xlu0 %605, %v252
  %v607 = vpop.permute.xlu0 %606
  %610 = vset.pattern.permute.xlu0 0
  %611 = vperm.xlu0 %610, %v253
  %v612 = vpop.permute.xlu0 %611
  %615 = vset.pattern.permute.xlu0 0
  %616 = vperm.xlu0 %615, %v254
  %v617 = vpop.permute.xlu0 %616
  %620 = vset.pattern.permute.xlu0 0
  %621 = vperm.xlu0 %620, %v255
  %v622 = vpop.permute.xlu0 %621
  %625 = vset.pattern.permute.xlu0 0
  %626 = vperm.xlu0 %625, %v256
  %v627 = vpop.permute.xlu0 %626
  %630 = vset.pattern.permute.xlu0 0
  %631 = vperm.xlu0 %630, %v257
  %v632 = vpop.permute.xlu0 %631
  %635 = vset.pattern.permute.xlu0 0
  %636 = vperm.xlu0 %635, %v258
  %v637 = vpop.permute.xlu0 %636
  %640 = vset.pattern.permute.xlu0 0
  %641 = vperm.xlu0 %640, %v259
  %v642 = vpop.permute.xlu0 %641
  %645 = vset.pattern.permute.xlu0 0
  %646 = vperm.xlu0 %645, %v260
  %v647 = vpop.permute.xlu0 %646
  %650 = vset.pattern.permute.xlu0 0
  %651 = vperm.xlu0 %650, %v261
  %v652 = vpop.permute.xlu0 %651
  %655 = vset.pattern.permute.xlu0 0
  %656 = vperm.xlu0 %655, %v262
  %v657 = vpop.permute.xlu0 %656
  %660 = vset.pattern.permute.xlu0 0
  %661 = vperm.xlu0 %660, %v263
  %v662 = vpop.permute.xlu0 %661
  %665 = vset.pattern.permute.xlu0 0
  %666 = vperm.xlu0 %665, %v264
  %v667 = vpop.permute.xlu0 %666
  %670 = vset.pattern.permute.xlu0 0
  %671 = vperm.xlu0 %670, %v265
  %v672 = vpop.permute.xlu0 %671
  %675 = vset.pattern.permute.xlu0 0
  %676 = vperm.xlu0 %675, %v266
  %v677 = vpop.permute.xlu0 %676
  %680 = vset.pattern.permute.xlu0 0
  %681 = vperm.xlu0 %680, %v267
  %v682 = vpop.permute.xlu0 %681
  %685 = vset.pattern.permute.xlu0 0
  %686 = vperm.xlu0 %685, %v268
  %v687 = vpop.permute.xlu0 %686
  %690 = vset.pattern.permute.xlu0 0
  %691 = vperm.xlu0 %690, %v269
  %v692 = vpop.permute.xlu0 %691
  %695 = vset.pattern.permute.xlu0 0
  %696 = vperm.xlu0 %695, %v270
  %v697 = vpop.permute.xlu0 %696
  %700 = vset.pattern.permute.xlu0 0
  %701 = vperm.xlu0 %700, %v271
  %v702 = vpop.permute.xlu0 %701
  %705 = vset.pattern.permute.xlu0 0
  %706 = vperm.xlu0 %705, %v272
  %v707 = vpop.permute.xlu0 %706
  %710 = vset.pattern.permute.xlu0 0
  %711 = vperm.xlu0 %710, %v273
  %v712 = vpop.permute.xlu0 %711
  %715 = vset.pattern.permute.xlu0 0
  %716 = vperm.xlu0 %715, %v274
  %v717 = vpop.permute.xlu0 %716
  %720 = vset.pattern.permute.xlu0 0
  %721 = vperm.xlu0 %720, %v275
  %v722 = vpop.permute.xlu0 %721
  %725 = vset.pattern.permute.xlu0 0
  %726 = vperm.xlu0 %725, %v276
  %v727 = vpop.permute.xlu0 %726
  %730 = vset.pattern.permute.xlu0 0
  %731 = vperm.xlu0 %730, %v277
  %v732 = vpop.permute.xlu0 %731
  %735 = vset.pattern.permute.xlu0 0
  %736 = vperm.xlu0 %735, %v278
  %v737 = vpop.permute.xlu0 %736
  %740 = vset.pattern.permute.xlu0 0
  %741 = vperm.xlu0 %740, %v279
  %v742 = vpop.permute.xlu0 %741
  %745 = vset.pattern.permute.xlu0 0
  %746 = vperm.xlu0 %745, %v280
  %v747 = vpop.permute.xlu0 %746
  %750 = vset.pattern.permute.xlu0 0
  %751 = vperm.xlu0 %750, %v281
  %v752 = vpop.permute.xlu0 %751
  %755 = vset.pattern.permute.xlu0 0
  %756 = vperm.xlu0 %755, %v282
  %v757 = vpop.permute.xlu0 %756
  %760 = vset.pattern.permute.xlu0 0
  %761 = vperm.xlu0 %760, %v283
  %v762 = vpop.permute.xlu0 %761
  %765 = vset.pattern.permute.xlu0 0
  %766 = vperm.xlu0 %765, %v284
  %v767 = vpop.permute.xlu0 %766
  %770 = vset.pattern.permute.xlu0 0
  %771 = vperm.xlu0 %770, %v285
  %v772 = vpop.permute.xlu0 %771
  %775 = vset.pattern.permute.xlu0 0
  %776 = vperm.xlu0 %775, %v286
  %v777 = vpop.permute.xlu0 %776
  %780 = vset.pattern.permute.xlu0 0
  %781 = vperm.xlu0 %780, %v287
  %v782 = vpop.permute.xlu0 %781
  %785 = vset.pattern.permute.xlu0 0
  %786 = vperm.xlu0 %785, %v288
  %v787 = vpop.permute.xlu0 %786
  %790 = vset.pattern.permute.xlu0 0
  %791 = vperm.xlu0 %790, %v289
  %v792 = vpop.permute.xlu0 %791
  %795 = vset.pattern.permute.xlu0 0
  %796 = vperm.xlu0 %795, %v290
  %v797 = vpop.permute.xlu0 %796
  %800 = vset.pattern.permute.xlu0 0
  %801 = vperm.xlu0 %800, %v291
  %v802 = vpop.permute.xlu0 %801
  %805 = vset.pattern.permute.xlu0 0
  %806 = vperm.xlu0 %805, %v292
  %v807 = vpop.permute.xlu0 %806
  %810 = vset.pattern.permute.xlu0 0
  %811 = vperm.xlu0 %810, %v293
  %v812 = vpop.permute.xlu0 %811
  %815 = vset.pattern.permute.xlu0 0
  %816 = vperm.xlu0 %815, %v294
  %v817 = vpop.permute.xlu0 %816
  %820 = vset.pattern.permute.xlu0 0
  %821 = vperm.xlu0 %820, %v295
  %v822 = vpop.permute.xlu0 %821
  %825 = vset.pattern.permute.xlu0 0
  %826 = vperm.xlu0 %825, %v296
  %v827 = vpop.permute.xlu0 %826
  %830 = vset.pattern.permute.xlu0 0
  %831 = vperm.xlu0 %830, %v297
  %v832 = vpop.permute.xlu0 %831
  %835 = vset.pattern.permute.xlu0 0
  %836 = vperm.xlu0 %835, %v298
  %v837 = vpop.permute.xlu0 %836
  %840 = vset.pattern.permute.xlu0 0
  %841 = vperm.xlu0 %840, %v299
  %v842 = vpop.permute.xlu0 %841
  %845 = vset.pattern.permute.xlu0 0
  %846 = vperm.xlu0 %845, %v300
  %v847 = vpop.permute.xlu0 %846
  %850 = vset.pattern.permute.xlu0 0
  %851 = vperm.xlu0 %850, %v301
  %v852 = vpop.permute.xlu0 %851
  %855 = vset.pattern.permute.xlu0 0
  %856 = vperm.xlu0 %855, %v302
  %v857 = vpop.permute.xlu0 %856
  %860 = vset.pattern.permute.xlu0 0
  %861 = vperm.xlu0 %860, %v303
  %v862 = vpop.permute.xlu0 %861
  %865 = vset.pattern.permute.xlu0 0
  %866 = vperm.xlu0 %865, %v304
  %v867 = vpop.permute.xlu0 %866
  %870 = vset.pattern.permute.xlu0 0
  %871 = vperm.xlu0 %870, %v305
  %v872 = vpop.permute.xlu0 %871
  %875 = vset.pattern.permute.xlu0 0
  %876 = vperm.xlu0 %875, %v306
  %v877 = vpop.permute.xlu0 %876
  %880 = vset.pattern.permute.xlu0 0
  %881 = vperm.xlu0 %880, %v307
  %v882 = vpop.permute.xlu0 %881
  %885 = vset.pattern.permute.xlu0 0
  %886 = vperm.xlu0 %885, %v308
  %v887 = vpop.permute.xlu0 %886
  %890 = vset.pattern.permute.xlu0 0
  %891 = vperm.xlu0 %890, %v309
  %v892 = vpop.permute.xlu0 %891
  %895 = vset.pattern.permute.xlu0 0
  %896 = vperm.xlu0 %895, %v310
  %v897 = vpop.permute.xlu0 %896
  %900 = vset.pattern.permute.xlu0 0
  %901 = vperm.xlu0 %900, %v311
  %v902 = vpop.permute.xlu0 %901
  %905 = vset.pattern.permute.xlu0 0
  %906 = vperm.xlu0 %905, %v312
  %v907 = vpop.permute.xlu0 %906
  %910 = vset.pattern.permute.xlu0 0
  %911 = vperm.xlu0 %910, %v313
  %v912 = vpop.permute.xlu0 %911
  %915 = vset.pattern.permute.xlu0 0
  %916 = vperm.xlu0 %915, %v314
  %v917 = vpop.permute.xlu0 %916
  %920 = vset.pattern.permute.xlu0 0
  %921 = vperm.xlu0 %920, %v315
  %v922 = vpop.permute.xlu0 %921
  %925 = vset.pattern.permute.xlu0 0
  %926 = vperm.xlu0 %925, %v316
  %v927 = vpop.permute.xlu0 %926
  %930 = vset.pattern.permute.xlu0 0
  %931 = vperm.xlu0 %930, %v317
  %v932 = vpop.permute.xlu0 %931
  %935 = vset.pattern.permute.xlu0 0
  %936 = vperm.xlu0 %935, %v318
  %v937 = vpop.permute.xlu0 %936
  %940 = vset.pattern.permute.xlu0 0
  %941 = vperm.xlu0 %940, %v319
  %v942 = vpop.permute.xlu0 %941
  %945 = vset.pattern.permute.xlu0 0
  %946 = vperm.xlu0 %945, %v320
  %v947 = vpop.permute.xlu0 %946
  %950 = vset.pattern.permute.xlu0 0
  %951 = vperm.xlu0 %950, %v321
  %v952 = vpop.permute.xlu0 %951
  %955 = vset.pattern.permute.xlu0 0
  %956 = vperm.xlu0 %955, %v322
  %v957 = vpop.permute.xlu0 %956
  %960 = vset.pattern.permute.xlu0 0
  %961 = vperm.xlu0 %960, %v323
  %v962 = vpop.permute.xlu0 %961
  %965 = vset.pattern.permute.xlu0 0
  %966 = vperm.xlu0 %965, %v324
  %v967 = vpop.permute.xlu0 %966
  %970 = vset.pattern.permute.xlu0 0
  %971 = vperm.xlu0 %970, %v325
  %v972 = vpop.permute.xlu0 %971
  %975 = vset.pattern.permute.xlu0 0
  %976 = vperm.xlu0 %975, %v326
  %v977 = vpop.permute.xlu0 %976
  %980 = vset.pattern.permute.xlu0 0
  %981 = vperm.xlu0 %980, %v327
  %v982 = vpop.permute.xlu0 %981
  %985 = vset.pattern.permute.xlu0 0
  %986 = vperm.xlu0 %985, %v328
  %v987 = vpop.permute.xlu0 %986
  %990 = vset.pattern.permute.xlu0 0
  %991 = vperm.xlu0 %990, %v329
  %v992 = vpop.permute.xlu0 %991
  %995 = vset.pattern.permute.xlu0 0
  %996 = vperm.xlu0 %995, %v330
  %v997 = vpop.permute.xlu0 %996
  %1000 = vset.pattern.permute.xlu0 0
  %1001 = vperm.xlu0 %1000, %v331
  %v1002 = vpop.permute.xlu0 %1001
  %1005 = vset.pattern.permute.xlu0 0
  %1006 = vperm.xlu0 %1005, %v332
  %v1007 = vpop.permute.xlu0 %1006
  %1010 = vset.pattern.permute.xlu0 0
  %1011 = vperm.xlu0 %1010, %v333
  %v1012 = vpop.permute.xlu0 %1011
  %1015 = vset.pattern.permute.xlu0 0
  %1016 = vperm.xlu0 %1015, %v334
  %v1017 = vpop.permute.xlu0 %1016
  %1020 = vset.pattern.permute.xlu0 0
  %1021 = vperm.xlu0 %1020, %v335
  %v1022 = vpop.permute.xlu0 %1021
  %1025 = vset.pattern.permute.xlu0 0
  %1026 = vperm.xlu0 %1025, %v336
  %v1027 = vpop.permute.xlu0 %1026
  %1030 = vset.pattern.permute.xlu0 0
  %1031 = vperm.xlu0 %1030, %v337
  %v1032 = vpop.permute.xlu0 %1031
  %1035 = vset.pattern.permute.xlu0 0
  %1036 = vperm.xlu0 %1035, %v338
  %v1037 = vpop.permute.xlu0 %1036
  %1040 = vset.pattern.permute.xlu0 0
  %1041 = vperm.xlu0 %1040, %v339
  %v1042 = vpop.permute.xlu0 %1041
  %1045 = vset.pattern.permute.xlu0 0
  %1046 = vperm.xlu0 %1045, %v340
  %v1047 = vpop.permute.xlu0 %1046
  %1050 = vset.pattern.permute.xlu0 0
  %1051 = vperm.xlu0 %1050, %v341
  %v1052 = vpop.permute.xlu0 %1051
  %1055 = vset.pattern.permute.xlu0 0
  %1056 = vperm.xlu0 %1055, %v342
  %v1057 = vpop.permute.xlu0 %1056
  %1060 = vset.pattern.permute.xlu0 0
  %1061 = vperm.xlu0 %1060, %v343
  %v1062 = vpop.permute.xlu0 %1061
  %1065 = vset.pattern.permute.xlu0 0
  %1066 = vperm.xlu0 %1065, %v344
  %v1067 = vpop.permute.xlu0 %1066
  %1070 = vset.pattern.permute.xlu0 0
  %1071 = vperm.xlu0 %1070, %v345
  %v1072 = vpop.permute.xlu0 %1071
  %1075 = vset.pattern.permute.xlu0 0
  %1076 = vperm.xlu0 %1075, %v346
  %v1077 = vpop.permute.xlu0 %1076
  %1080 = vset.pattern.permute.xlu0 0
  %1081 = vperm.xlu0 %1080, %v347
  %v1082 = vpop.permute.xlu0 %1081
  %1085 = vset.pattern.permute.xlu0 0
  %1086 = vperm.xlu0 %1085, %v348
  %v1087 = vpop.permute.xlu0 %1086
  %1090 = vset.pattern.permute.xlu0 0
  %1091 = vperm.xlu0 %1090, %v349
  %v1092 = vpop.permute.xlu0 %1091
  %1095 = vset.pattern.permute.xlu0 0
  %1096 = vperm.xlu0 %1095, %v350
  %v1097 = vpop.permute.xlu0 %1096
  %1100 = vset.pattern.permute.xlu0 0
  %1101 = vperm.xlu0 %1100, %v351
  %v1102 = vpop.permute.xlu0 %1101
  %1105 = vset.pattern.permute.xlu0 0
  %1106 = vperm.xlu0 %1105, %v352
  %v1107 = vpop.permute.xlu0 %1106
  %1110 = vset.pattern.permute.xlu0 0
  %1111 = vperm.xlu0 %1110, %v353
  %v1112 = vpop.permute.xlu0 %1111
  %1115 = vset.pattern.permute.xlu0 0
  %1116 = vperm.xlu0 %1115, %v354
  %v1117 = vpop.permute.xlu0 %1116
  %1120 = vset.pattern.permute.xlu0 0
  %1121 = vperm.xlu0 %1120, %v355
  %v1122 = vpop.permute.xlu0 %1121
  %1125 = vset.pattern.permute.xlu0 0
  %1126 = vperm.xlu0 %1125, %v356
  %v1127 = vpop.permute.xlu0 %1126
  %1130 = vset.pattern.permute.xlu0 0
  %1131 = vperm.xlu0 %1130, %v357
  %v1132 = vpop.permute.xlu0 %1131
  %1135 = vset.pattern.permute.xlu0 0
  %1136 = vperm.xlu0 %1135, %v358
  %v1137 = vpop.permute.xlu0 %1136
  %1140 = vset.pattern.permute.xlu0 0
  %1141 = vperm.xlu0 %1140, %v359
  %v1142 = vpop.permute.xlu0 %1141
  %1145 = vset.pattern.permute.xlu0 0
  %1146 = vperm.xlu0 %1145, %v360
  %v1147 = vpop.permute.xlu0 %1146
  %1150 = vset.pattern.permute.xlu0 0
  %1151 = vperm.xlu0 %1150, %v361
  %v1152 = vpop.permute.xlu0 %1151
  %1155 = vset.pattern.permute.xlu0 0
  %1156 = vperm.xlu0 %1155, %v362
  %v1157 = vpop.permute.xlu0 %1156
  %1160 = vset.pattern.permute.xlu0 0
  %1161 = vperm.xlu0 %1160, %v363
  %v1162 = vpop.permute.xlu0 %1161
  %1165 = vset.pattern.permute.xlu0 0
  %1166 = vperm.xlu0 %1165, %v364
  %v1167 = vpop.permute.xlu0 %1166
  %1170 = vset.pattern.permute.xlu0 0
  %1171 = vperm.xlu0 %1170, %v365
  %v1172 = vpop.permute.xlu0 %1171
  %1175 = vset.pattern.permute.xlu0 0
  %1176 = vperm.xlu0 %1175, %v366
  %v1177 = vpop.permute.xlu0 %1176
  %1180 = vset.pattern.permute.xlu0 0
  %1181 = vperm.xlu0 %1180, %v367
  %v1182 = vpop.permute.xlu0 %1181
  %1185 = vset.pattern.permute.xlu0 0
  %1186 = vperm.xlu0 %1185, %v368
  %v1187 = vpop.permute.xlu0 %1186
  %1190 = vset.pattern.permute.xlu0 0
  %1191 = vperm.xlu0 %1190, %v369
  %v1192 = vpop.permute.xlu0 %1191
  %1195 = vset.pattern.permute.xlu0 0
  %1196 = vperm.xlu0 %1195, %v370
  %v1197 = vpop.permute.xlu0 %1196
  %1200 = vset.pattern.permute.xlu0 0
  %1201 = vperm.xlu0 %1200, %v371
  %v1202 = vpop.permute.xlu0 %1201
  %1205 = vset.pattern.permute.xlu0 0
  %1206 = vperm.xlu0 %1205, %v372
  %v1207 = vpop.permute.xlu0 %1206
  %1210 = vset.pattern.permute.xlu0 0
  %1211 = vperm.xlu0 %1210, %v373
  %v1212 = vpop.permute.xlu0 %1211
  %1215 = vset.pattern.permute.xlu0 0
  %1216 = vperm.xlu0 %1215, %v374
  %v1217 = vpop.permute.xlu0 %1216
  %1220 = vset.pattern.permute.xlu0 0
  %1221 = vperm.xlu0 %1220, %v375
  %v1222 = vpop.permute.xlu0 %1221
  %1225 = vset.pattern.permute.xlu0 0
  %1226 = vperm.xlu0 %1225, %v376
  %v1227 = vpop.permute.xlu0 %1226
  %1230 = vset.pattern.permute.xlu0 0
  %1231 = vperm.xlu0 %1230, %v377
  %v1232 = vpop.permute.xlu0 %1231
  %1235 = vset.pattern.permute.xlu0 0
  %1236 = vperm.xlu0 %1235, %v378
  %v1237 = vpop.permute.xlu0 %1236
  %1240 = vset.pattern.permute.xlu0 0
  %1241 = vperm.xlu0 %1240, %v379
  %v1242 = vpop.permute.xlu0 %1241
  %1245 = vset.pattern.permute.xlu0 0
  %1246 = vperm.xlu0 %1245, %v380
  %v1247 = vpop.permute.xlu0 %1246
  %1250 = vset.pattern.permute.xlu0 0
  %1251 = vperm.xlu0 %1250, %v381
  %v1252 = vpop.permute.xlu0 %1251
  %1255 = vset.pattern.permute.xlu0 0
  %1256 = vperm.xlu0 %1255, %v382
  %v1257 = vpop.permute.xlu0 %1256
  %1260 = vset.pattern.permute.xlu0 0
  %1261 = vperm.xlu0 %1260, %v383
  %v1262 = vpop.permute.xlu0 %1261
  %1265 = vset.pattern.permute.xlu0 0
  %1266 = vperm.xlu0 %1265, %v384
  %v1267 = vpop.permute.xlu0 %1266
  %1270 = vset.pattern.permute.xlu0 0
  %1271 = vperm.xlu0 %1270, %v385
  %v1272 = vpop.permute.xlu0 %1271
  %1275 = vset.pattern.permute.xlu0 0
  %1276 = vperm.xlu0 %1275, %v386
  %v1277 = vpop.permute.xlu0 %1276
  %1280 = vset.pattern.permute.xlu0 0
  %1281 = vperm.xlu0 %1280, %v387
  %v1282 = vpop.permute.xlu0 %1281
  %1285 = vset.pattern.permute.xlu0 0
  %1286 = vperm.xlu0 %1285, %v388
  %v1287 = vpop.permute.xlu0 %1286
  %1290 = vset.pattern.permute.xlu0 0
  %1291 = vperm.xlu0 %1290, %v389
  %v1292 = vpop.permute.xlu0 %1291
  %1295 = vset.pattern.permute.xlu0 0
  %1296 = vperm.xlu0 %1295, %v390
  %v1297 = vpop.permute.xlu0 %1296
  %1300 = vset.pattern.permute.xlu0 0
  %1301 = vperm.xlu0 %1300, %v391
  %v1302 = vpop.permute.xlu0 %1301
  %1305 = vset.pattern.permute.xlu0 0
  %1306 = vperm.xlu0 %1305, %v392
  %v1307 = vpop.permute.xlu0 %1306
  %1310 = vset.pattern.permute.xlu0 0
  %1311 = vperm.xlu0 %1310, %v393
  %v1312 = vpop.permute.xlu0 %1311
  %1315 = vset.pattern.permute.xlu0 0
  %1316 = vperm.xlu0 %1315, %v394
  %v1317 = vpop.permute.xlu0 %1316
  %1320 = vset.pattern.permute.xlu0 0
  %1321 = vperm.xlu0 %1320, %v395
  %v1322 = vpop.permute.xlu0 %1321
  %1325 = vset.pattern.permute.xlu0 0
  %1326 = vperm.xlu0 %1325, %v396
  %v1327 = vpop.permute.xlu0 %1326
  %1330 = vset.pattern.permute.xlu0 0
  %1331 = vperm.xlu0 %1330, %v397
  %v1332 = vpop.permute.xlu0 %1331
  %1335 = vset.pattern.permute.xlu0 0
  %1336 = vperm.xlu0 %1335, %v398
  %v1337 = vpop.permute.xlu0 %1336
  %1340 = vset.pattern.permute.xlu0 0
  %1341 = vperm.xlu0 %1340, %v399
  %v1342 = vpop.permute.xlu0 %1341
  %1345 = vset.pattern.permute.xlu0 0
  %1346 = vperm.xlu0 %1345, %v400
  %v1347 = vpop.permute.xlu0 %1346
  %1350 = vset.pattern.permute.xlu0 0
  %1351 = vperm.xlu0 %1350, %v401
  %v1352 = vpop.permute.xlu0 %1351
  %1355 = vset.pattern.permute.xlu0 0
  %1356 = vperm.xlu0 %1355, %v402
  %v1357 = vpop.permute.xlu0 %1356
  %1360 = vset.pattern.permute.xlu0 0
  %1361 = vperm.xlu0 %1360, %v403
  %v1362 = vpop.permute.xlu0 %1361
  %1365 = vset.pattern.permute.xlu0 0
  %1366 = vperm.xlu0 %1365, %v404
  %v1367 = vpop.permute.xlu0 %1366
  %1370 = vset.pattern.permute.xlu0 0
  %1371 = vperm.xlu0 %1370, %v405
  %v1372 = vpop.permute.xlu0 %1371
  %1375 = vset.pattern.permute.xlu0 0
  %1376 = vperm.xlu0 %1375, %v406
  %v1377 = vpop.permute.xlu0 %1376
  %1380 = vset.pattern.permute.xlu0 0
  %1381 = vperm.xlu0 %1380, %v407
  %v1382 = vpop.permute.xlu0 %1381
  %1385 = vset.pattern.permute.xlu0 0
  %1386 = vperm.xlu0 %1385, %v408
  %v1387 = vpop.permute.xlu0 %1386
  %1390 = vset.pattern.permute.xlu0 0
  %1391 = vperm.xlu0 %1390, %v409
  %v1392 = vpop.permute.xlu0 %1391
  %1395 = vset.pattern.permute.xlu0 0
  %1396 = vperm.xlu0 %1395, %v410
  %v1397 = vpop.permute.xlu0 %1396
  %1400 = vset.pattern.permute.xlu0 0
  %1401 = vperm.xlu0 %1400, %v411
  %v1402 = vpop.permute.xlu0 %1401
  %1405 = vset.pattern.permute.xlu0 0
  %1406 = vperm.xlu0 %1405, %v412
  %v1407 = vpop.permute.xlu0 %1406
  %1410 = vset.pattern.permute.xlu0 0
  %1411 = vperm.xlu0 %1410, %v413
  %v1412 = vpop.permute.xlu0 %1411
  %1415 = vset.pattern.permute.xlu0 0
  %1416 = vperm.xlu0 %1415, %v414
  %v1417 = vpop.permute.xlu0 %1416
  %1420 = vset.pattern.permute.xlu0 0
  %1421 = vperm.xlu0 %1420, %v415
  %v1422 = vpop.permute.xlu0 %1421
  %1425 = vset.pattern.permute.xlu0 0
  %1426 = vperm.xlu0 %1425, %v416
  %v1427 = vpop.permute.xlu0 %1426
  %1430 = vset.pattern.permute.xlu0 0
  %1431 = vperm.xlu0 %1430, %v417
  %v1432 = vpop.permute.xlu0 %1431
  %1435 = vset.pattern.permute.xlu0 0
  %1436 = vperm.xlu0 %1435, %v418
  %v1437 = vpop.permute.xlu0 %1436
  %v1439 = vmul.f32 %v11, %v422
  %v1440 = vmul.f32 %v12, %v427
  %v1441 = vmul.f32 %v13, %v432
  %v1442 = vmul.f32 %v14, %v437
  %v1443 = vmul.f32 %v15, %v442
  %v1444 = vmul.f32 %v16, %v447
  %v1445 = vmul.f32 %v17, %v452
  %v1446 = vmul.f32 %v18, %v457
  %v1447 = vmul.f32 %v19, %v462
  %v1448 = vmul.f32 %v20, %v467
  %v1449 = vmul.f32 %v21, %v472
  %v1450 = vmul.f32 %v22, %v477
  %v1451 = vmul.f32 %v23, %v482
  %v1452 = vmul.f32 %v24, %v487
  %v1453 = vmul.f32 %v25, %v492
  %v1454 = vmul.f32 %v26, %v497
  %v1455 = vmul.f32 %v27, %v502
  %v1456 = vmul.f32 %v28, %v507
  %v1457 = vmul.f32 %v29, %v512
  %v1458 = vmul.f32 %v30, %v517
  %v1459 = vmul.f32 %v31, %v522
  %v1460 = vmul.f32 %v32, %v527
  %v1461 = vmul.f32 %v33, %v532
  %v1462 = vmul.f32 %v34, %v537
  %v1463 = vmul.f32 %v35, %v542
  %v1464 = vmul.f32 %v36, %v547
  %v1465 = vmul.f32 %v37, %v552
  %v1466 = vmul.f32 %v38, %v557
  %v1467 = vmul.f32 %v39, %v562
  %v1468 = vmul.f32 %v40, %v567
  %v1469 = vmul.f32 %v41, %v572
  %v1470 = vmul.f32 %v42, %v577
  %v1471 = vmul.f32 %v43, %v582
  %v1472 = vmul.f32 %v44, %v587
  %v1473 = vmul.f32 %v45, %v592
  %v1474 = vmul.f32 %v46, %v597
  %v1475 = vmul.f32 %v47, %v602
  %v1476 = vmul.f32 %v48, %v607
  %v1477 = vmul.f32 %v49, %v612
  %v1478 = vmul.f32 %v50, %v617
  %v1479 = vmul.f32 %v51, %v622
  %v1480 = vmul.f32 %v52, %v627
  %v1481 = vmul.f32 %v53, %v632
  %v1482 = vmul.f32 %v54, %v637
  %v1483 = vmul.f32 %v55, %v642
  %v1484 = vmul.f32 %v56, %v647
  %v1485 = vmul.f32 %v57, %v652
  %v1486 = vmul.f32 %v58, %v657
  %v1487 = vmul.f32 %v59, %v662
  %v1488 = vmul.f32 %v60, %v667
  %v1489 = vmul.f32 %v61, %v672
  %v1490 = vmul.f32 %v62, %v677
  %v1491 = vmul.f32 %v63, %v682
  %v1492 = vmul.f32 %v64, %v687
  %v1493 = vmul.f32 %v65, %v692
  %v1494 = vmul.f32 %v66, %v697
  %v1495 = vmul.f32 %v67, %v702
  %v1496 = vmul.f32 %v68, %v707
  %v1497 = vmul.f32 %v69, %v712
  %v1498 = vmul.f32 %v70, %v717
  %v1499 = vmul.f32 %v71, %v722
  %v1500 = vmul.f32 %v72, %v727
  %v1501 = vmul.f32 %v73, %v732
  %v1502 = vmul.f32 %v74, %v737
  %v1503 = vmul.f32 %v75, %v742
  %v1504 = vmul.f32 %v76, %v747
  %v1505 = vmul.f32 %v77, %v752
  %v1506 = vmul.f32 %v78, %v757
  %v1507 = vmul.f32 %v79, %v762
  %v1508 = vmul.f32 %v80, %v767
  %v1509 = vmul.f32 %v81, %v772
  %v1510 = vmul.f32 %v82, %v777
  %v1511 = vmul.f32 %v83, %v782
  %v1512 = vmul.f32 %v84, %v787
  %v1513 = vmul.f32 %v85, %v792
  %v1514 = vmul.f32 %v86, %v797
  %v1515 = vmul.f32 %v87, %v802
  %v1516 = vmul.f32 %v88, %v807
  %v1517 = vmul.f32 %v89, %v812
  %v1518 = vmul.f32 %v90, %v817
  %v1519 = vmul.f32 %v91, %v822
  %v1520 = vmul.f32 %v92, %v827
  %v1521 = vmul.f32 %v93, %v832
  %v1522 = vmul.f32 %v94, %v837
  %v1523 = vmul.f32 %v95, %v842
  %v1524 = vmul.f32 %v96, %v847
  %v1525 = vmul.f32 %v97, %v852
  %v1526 = vmul.f32 %v98, %v857
  %v1527 = vmul.f32 %v99, %v862
  %v1528 = vmul.f32 %v100, %v867
  %v1529 = vmul.f32 %v101, %v872
  %v1530 = vmul.f32 %v102, %v877
  %v1531 = vmul.f32 %v103, %v882
  %v1532 = vmul.f32 %v104, %v887
  %v1533 = vmul.f32 %v105, %v892
  %v1534 = vmul.f32 %v106, %v897
  %v1535 = vmul.f32 %v107, %v902
  %v1536 = vmul.f32 %v108, %v907
  %v1537 = vmul.f32 %v109, %v912
  %v1538 = vmul.f32 %v110, %v917
  %v1539 = vmul.f32 %v111, %v922
  %v1540 = vmul.f32 %v112, %v927
  %v1541 = vmul.f32 %v113, %v932
  %v1542 = vmul.f32 %v114, %v937
  %v1543 = vmul.f32 %v115, %v942
  %v1544 = vmul.f32 %v116, %v947
  %v1545 = vmul.f32 %v117, %v952
  %v1546 = vmul.f32 %v118, %v957
  %v1547 = vmul.f32 %v119, %v962
  %v1548 = vmul.f32 %v120, %v967
  %v1549 = vmul.f32 %v121, %v972
  %v1550 = vmul.f32 %v122, %v977
  %v1551 = vmul.f32 %v123, %v982
  %v1552 = vmul.f32 %v124, %v987
  %v1553 = vmul.f32 %v125, %v992
  %v1554 = vmul.f32 %v126, %v997
  %v1555 = vmul.f32 %v127, %v1002
  %v1556 = vmul.f32 %v128, %v1007
  %v1557 = vmul.f32 %v129, %v1012
  %v1558 = vmul.f32 %v130, %v1017
  %v1559 = vmul.f32 %v131, %v1022
  %v1560 = vmul.f32 %v132, %v1027
  %v1561 = vmul.f32 %v133, %v1032
  %v1562 = vmul.f32 %v134, %v1037
  %v1563 = vmul.f32 %v135, %v1042
  %v1564 = vmul.f32 %v136, %v1047
  %v1565 = vmul.f32 %v137, %v1052
  %v1566 = vmul.f32 %v138, %v1057
  %v1567 = vmul.f32 %v139, %v1062
  %v1568 = vmul.f32 %v140, %v1067
  %v1569 = vmul.f32 %v141, %v1072
  %v1570 = vmul.f32 %v142, %v1077
  %v1571 = vmul.f32 %v143, %v1082
  %v1572 = vmul.f32 %v144, %v1087
  %v1573 = vmul.f32 %v145, %v1092
  %v1574 = vmul.f32 %v146, %v1097
  %v1575 = vmul.f32 %v147, %v1102
  %v1576 = vmul.f32 %v148, %v1107
  %v1577 = vmul.f32 %v149, %v1112
  %v1578 = vmul.f32 %v150, %v1117
  %v1579 = vmul.f32 %v151, %v1122
  %v1580 = vmul.f32 %v152, %v1127
  %v1581 = vmul.f32 %v153, %v1132
  %v1582 = vmul.f32 %v154, %v1137
  %v1583 = vmul.f32 %v155, %v1142
  %v1584 = vmul.f32 %v156, %v1147
  %v1585 = vmul.f32 %v157, %v1152
  %v1586 = vmul.f32 %v158, %v1157
  %v1587 = vmul.f32 %v159, %v1162
  %v1588 = vmul.f32 %v160, %v1167
  %v1589 = vmul.f32 %v161, %v1172
  %v1590 = vmul.f32 %v162, %v1177
  %v1591 = vmul.f32 %v163, %v1182
  %v1592 = vmul.f32 %v164, %v1187
  %v1593 = vmul.f32 %v165, %v1192
  %v1594 = vmul.f32 %v166, %v1197
  %v1595 = vmul.f32 %v167, %v1202
  %v1596 = vmul.f32 %v168, %v1207
  %v1597 = vmul.f32 %v169, %v1212
  %v1598 = vmul.f32 %v170, %v1217
  %v1599 = vmul.f32 %v171, %v1222
  %v1600 = vmul.f32 %v172, %v1227
  %v1601 = vmul.f32 %v173, %v1232
  %v1602 = vmul.f32 %v174, %v1237
  %v1603 = vmul.f32 %v175, %v1242
  %v1604 = vmul.f32 %v176, %v1247
  %v1605 = vmul.f32 %v177, %v1252
  %v1606 = vmul.f32 %v178, %v1257
  %v1607 = vmul.f32 %v179, %v1262
  %v1608 = vmul.f32 %v180, %v1267
  %v1609 = vmul.f32 %v181, %v1272
  %v1610 = vmul.f32 %v182, %v1277
  %v1611 = vmul.f32 %v183, %v1282
  %v1612 = vmul.f32 %v184, %v1287
  %v1613 = vmul.f32 %v185, %v1292
  %v1614 = vmul.f32 %v186, %v1297
  %v1615 = vmul.f32 %v187, %v1302
  %v1616 = vmul.f32 %v188, %v1307
  %v1617 = vmul.f32 %v189, %v1312
  %v1618 = vmul.f32 %v190, %v1317
  %v1619 = vmul.f32 %v191, %v1322
  %v1620 = vmul.f32 %v192, %v1327
  %v1621 = vmul.f32 %v193, %v1332
  %v1622 = vmul.f32 %v194, %v1337
  %v1623 = vmul.f32 %v195, %v1342
  %v1624 = vmul.f32 %v196, %v1347
  %v1625 = vmul.f32 %v197, %v1352
  %v1626 = vmul.f32 %v198, %v1357
  %v1627 = vmul.f32 %v199, %v1362
  %v1628 = vmul.f32 %v200, %v1367
  %v1629 = vmul.f32 %v201, %v1372
  %v1630 = vmul.f32 %v202, %v1377
  %v1631 = vmul.f32 %v203, %v1382
  %v1632 = vmul.f32 %v204, %v1387
  %v1633 = vmul.f32 %v205, %v1392
  %v1634 = vmul.f32 %v206, %v1397
  %v1635 = vmul.f32 %v207, %v1402
  %v1636 = vmul.f32 %v208, %v1407
  %v1637 = vmul.f32 %v209, %v1412
  %v1638 = vmul.f32 %v210, %v1417
  %v1639 = vmul.f32 %v211, %v1422
  %v1640 = vmul.f32 %v212, %v1427
  %v1641 = vmul.f32 %v213, %v1432
  %v1642 = vmul.f32 %v214, %v1437
  %vm1643 = vcmask 400384
  %1644 = vst.msk [vmem:[%s2] sm:$0xff] %vm1643, %v1439
  %1645 = vst.msk [vmem:[%s2 + $0x8] sm:$0xff] %vm1643, %v1440
  %1646 = vst.msk [vmem:[%s2 + $0x10] sm:$0xff] %vm1643, %v1441
  %1647 = vst.msk [vmem:[%s2 + $0x18] sm:$0xff] %vm1643, %v1442
  %1648 = vst.msk [vmem:[%s2 + $0x20] sm:$0xff] %vm1643, %v1443
  %1649 = vst.msk [vmem:[%s2 + $0x28] sm:$0xff] %vm1643, %v1444
  %1650 = vst.msk [vmem:[%s2 + $0x30] sm:$0xff] %vm1643, %v1445
  %1651 = vst.msk [vmem:[%s2 + $0x38] sm:$0xff] %vm1643, %v1446
  %1652 = vst.msk [vmem:[%s2 + $0x40] sm:$0xff] %vm1643, %v1447
  %1653 = vst.msk [vmem:[%s2 + $0x48] sm:$0xff] %vm1643, %v1448
  %1654 = vst.msk [vmem:[%s2 + $0x50] sm:$0xff] %vm1643, %v1449
  %1655 = vst.msk [vmem:[%s2 + $0x58] sm:$0xff] %vm1643, %v1450
  %1656 = vst.msk [vmem:[%s2 + $0x60] sm:$0xff] %vm1643, %v1451
  %1657 = vst.msk [vmem:[%s2 + $0x68] sm:$0xff] %vm1643, %v1452
  %1658 = vst.msk [vmem:[%s2 + $0x70] sm:$0xff] %vm1643, %v1453
  %1659 = vst.msk [vmem:[%s2 + $0x78] sm:$0xff] %vm1643, %v1454
  %1660 = vst.msk [vmem:[%s2 + $0x80] sm:$0xff] %vm1643, %v1455
  %1661 = vst.msk [vmem:[%s2 + $0x88] sm:$0xff] %vm1643, %v1456
  %1662 = vst.msk [vmem:[%s2 + $0x90] sm:$0xff] %vm1643, %v1457
  %1663 = vst.msk [vmem:[%s2 + $0x98] sm:$0xff] %vm1643, %v1458
  %1664 = vst.msk [vmem:[%s2 + $0xa0] sm:$0xff] %vm1643, %v1459
  %1665 = vst.msk [vmem:[%s2 + $0xa8] sm:$0xff] %vm1643, %v1460
  %1666 = vst.msk [vmem:[%s2 + $0xb0] sm:$0xff] %vm1643, %v1461
  %1667 = vst.msk [vmem:[%s2 + $0xb8] sm:$0xff] %vm1643, %v1462
  %1668 = vst.msk [vmem:[%s2 + $0xc0] sm:$0xff] %vm1643, %v1463
  %1669 = vst.msk [vmem:[%s2 + $0xc8] sm:$0xff] %vm1643, %v1464
  %1670 = vst.msk [vmem:[%s2 + $0xd0] sm:$0xff] %vm1643, %v1465
  %1671 = vst.msk [vmem:[%s2 + $0xd8] sm:$0xff] %vm1643, %v1466
  %1672 = vst.msk [vmem:[%s2 + $0xe0] sm:$0xff] %vm1643, %v1467
  %1673 = vst.msk [vmem:[%s2 + $0xe8] sm:$0xff] %vm1643, %v1468
  %1674 = vst.msk [vmem:[%s2 + $0xf0] sm:$0xff] %vm1643, %v1469
  %1675 = vst.msk [vmem:[%s2 + $0xf8] sm:$0xff] %vm1643, %v1470
  %1676 = vst.msk [vmem:[%s2 + $0x100] sm:$0xff] %vm1643, %v1471
  %1677 = vst.msk [vmem:[%s2 + $0x108] sm:$0xff] %vm1643, %v1472
  %1678 = vst.msk [vmem:[%s2 + $0x110] sm:$0xff] %vm1643, %v1473
  %1679 = vst.msk [vmem:[%s2 + $0x118] sm:$0xff] %vm1643, %v1474
  %1680 = vst.msk [vmem:[%s2 + $0x120] sm:$0xff] %vm1643, %v1475
  %1681 = vst.msk [vmem:[%s2 + $0x128] sm:$0xff] %vm1643, %v1476
  %1682 = vst.msk [vmem:[%s2 + $0x130] sm:$0xff] %vm1643, %v1477
  %1683 = vst.msk [vmem:[%s2 + $0x138] sm:$0xff] %vm1643, %v1478
  %1684 = vst.msk [vmem:[%s2 + $0x140] sm:$0xff] %vm1643, %v1479
  %1685 = vst.msk [vmem:[%s2 + $0x148] sm:$0xff] %vm1643, %v1480
  %1686 = vst.msk [vmem:[%s2 + $0x150] sm:$0xff] %vm1643, %v1481
  %1687 = vst.msk [vmem:[%s2 + $0x158] sm:$0xff] %vm1643, %v1482
  %1688 = vst.msk [vmem:[%s2 + $0x160] sm:$0xff] %vm1643, %v1483
  %1689 = vst.msk [vmem:[%s2 + $0x168] sm:$0xff] %vm1643, %v1484
  %1690 = vst.msk [vmem:[%s2 + $0x170] sm:$0xff] %vm1643, %v1485
  %1691 = vst.msk [vmem:[%s2 + $0x178] sm:$0xff] %vm1643, %v1486
  %1692 = vst.msk [vmem:[%s2 + $0x180] sm:$0xff] %vm1643, %v1487
  %1693 = vst.msk [vmem:[%s2 + $0x188] sm:$0xff] %vm1643, %v1488
  %1694 = vst.msk [vmem:[%s2 + $0x190] sm:$0xff] %vm1643, %v1489
  %1695 = vst.msk [vmem:[%s2 + $0x198] sm:$0xff] %vm1643, %v1490
  %1696 = vst.msk [vmem:[%s2 + $0x1a0] sm:$0xff] %vm1643, %v1491
  %1697 = vst.msk [vmem:[%s2 + $0x1a8] sm:$0xff] %vm1643, %v1492
  %1698 = vst.msk [vmem:[%s2 + $0x1b0] sm:$0xff] %vm1643, %v1493
  %1699 = vst.msk [vmem:[%s2 + $0x1b8] sm:$0xff] %vm1643, %v1494
  %1700 = vst.msk [vmem:[%s2 + $0x1c0] sm:$0xff] %vm1643, %v1495
  %1701 = vst.msk [vmem:[%s2 + $0x1c8] sm:$0xff] %vm1643, %v1496
  %1702 = vst.msk [vmem:[%s2 + $0x1d0] sm:$0xff] %vm1643, %v1497
  %1703 = vst.msk [vmem:[%s2 + $0x1d8] sm:$0xff] %vm1643, %v1498
  %1704 = vst.msk [vmem:[%s2 + $0x1e0] sm:$0xff] %vm1643, %v1499
  %1705 = vst.msk [vmem:[%s2 + $0x1e8] sm:$0xff] %vm1643, %v1500
  %1706 = vst.msk [vmem:[%s2 + $0x1f0] sm:$0xff] %vm1643, %v1501
  %1707 = vst.msk [vmem:[%s2 + $0x1f8] sm:$0xff] %vm1643, %v1502
  %1708 = vst.msk [vmem:[%s2 + $0x200] sm:$0xff] %vm1643, %v1503
  %1709 = vst.msk [vmem:[%s2 + $0x208] sm:$0xff] %vm1643, %v1504
  %1710 = vst.msk [vmem:[%s2 + $0x210] sm:$0xff] %vm1643, %v1505
  %1711 = vst.msk [vmem:[%s2 + $0x218] sm:$0xff] %vm1643, %v1506
  %1712 = vst.msk [vmem:[%s2 + $0x220] sm:$0xff] %vm1643, %v1507
  %1713 = vst.msk [vmem:[%s2 + $0x228] sm:$0xff] %vm1643, %v1508
  %1714 = vst.msk [vmem:[%s2 + $0x230] sm:$0xff] %vm1643, %v1509
  %1715 = vst.msk [vmem:[%s2 + $0x238] sm:$0xff] %vm1643, %v1510
  %1716 = vst.msk [vmem:[%s2 + $0x240] sm:$0xff] %vm1643, %v1511
  %1717 = vst.msk [vmem:[%s2 + $0x248] sm:$0xff] %vm1643, %v1512
  %1718 = vst.msk [vmem:[%s2 + $0x250] sm:$0xff] %vm1643, %v1513
  %1719 = vst.msk [vmem:[%s2 + $0x258] sm:$0xff] %vm1643, %v1514
  %1720 = vst.msk [vmem:[%s2 + $0x260] sm:$0xff] %vm1643, %v1515
  %1721 = vst.msk [vmem:[%s2 + $0x268] sm:$0xff] %vm1643, %v1516
  %1722 = vst.msk [vmem:[%s2 + $0x270] sm:$0xff] %vm1643, %v1517
  %1723 = vst.msk [vmem:[%s2 + $0x278] sm:$0xff] %vm1643, %v1518
  %1724 = vst.msk [vmem:[%s2 + $0x280] sm:$0xff] %vm1643, %v1519
  %1725 = vst.msk [vmem:[%s2 + $0x288] sm:$0xff] %vm1643, %v1520
  %1726 = vst.msk [vmem:[%s2 + $0x290] sm:$0xff] %vm1643, %v1521
  %1727 = vst.msk [vmem:[%s2 + $0x298] sm:$0xff] %vm1643, %v1522
  %1728 = vst.msk [vmem:[%s2 + $0x2a0] sm:$0xff] %vm1643, %v1523
  %1729 = vst.msk [vmem:[%s2 + $0x2a8] sm:$0xff] %vm1643, %v1524
  %1730 = vst.msk [vmem:[%s2 + $0x2b0] sm:$0xff] %vm1643, %v1525
  %1731 = vst.msk [vmem:[%s2 + $0x2b8] sm:$0xff] %vm1643, %v1526
  %1732 = vst.msk [vmem:[%s2 + $0x2c0] sm:$0xff] %vm1643, %v1527
  %1733 = vst.msk [vmem:[%s2 + $0x2c8] sm:$0xff] %vm1643, %v1528
  %1734 = vst.msk [vmem:[%s2 + $0x2d0] sm:$0xff] %vm1643, %v1529
  %1735 = vst.msk [vmem:[%s2 + $0x2d8] sm:$0xff] %vm1643, %v1530
  %1736 = vst.msk [vmem:[%s2 + $0x2e0] sm:$0xff] %vm1643, %v1531
  %1737 = vst.msk [vmem:[%s2 + $0x2e8] sm:$0xff] %vm1643, %v1532
  %1738 = vst.msk [vmem:[%s2 + $0x2f0] sm:$0xff] %vm1643, %v1533
  %1739 = vst.msk [vmem:[%s2 + $0x2f8] sm:$0xff] %vm1643, %v1534
  %1740 = vst.msk [vmem:[%s2 + $0x300] sm:$0xff] %vm1643, %v1535
  %1741 = vst.msk [vmem:[%s2 + $0x308] sm:$0xff] %vm1643, %v1536
  %1742 = vst.msk [vmem:[%s2 + $0x310] sm:$0xff] %vm1643, %v1537
  %1743 = vst.msk [vmem:[%s2 + $0x318] sm:$0xff] %vm1643, %v1538
  %1744 = vst.msk [vmem:[%s2 + $0x320] sm:$0xff] %vm1643, %v1539
  %1745 = vst.msk [vmem:[%s2 + $0x328] sm:$0xff] %vm1643, %v1540
  %1746 = vst.msk [vmem:[%s2 + $0x330] sm:$0xff] %vm1643, %v1541
  %1747 = vst.msk [vmem:[%s2 + $0x338] sm:$0xff] %vm1643, %v1542
  %1748 = vst.msk [vmem:[%s2 + $0x340] sm:$0xff] %vm1643, %v1543
  %1749 = vst.msk [vmem:[%s2 + $0x348] sm:$0xff] %vm1643, %v1544
  %1750 = vst.msk [vmem:[%s2 + $0x350] sm:$0xff] %vm1643, %v1545
  %1751 = vst.msk [vmem:[%s2 + $0x358] sm:$0xff] %vm1643, %v1546
  %1752 = vst.msk [vmem:[%s2 + $0x360] sm:$0xff] %vm1643, %v1547
  %1753 = vst.msk [vmem:[%s2 + $0x368] sm:$0xff] %vm1643, %v1548
  %1754 = vst.msk [vmem:[%s2 + $0x370] sm:$0xff] %vm1643, %v1549
  %1755 = vst.msk [vmem:[%s2 + $0x378] sm:$0xff] %vm1643, %v1550
  %1756 = vst.msk [vmem:[%s2 + $0x380] sm:$0xff] %vm1643, %v1551
  %1757 = vst.msk [vmem:[%s2 + $0x388] sm:$0xff] %vm1643, %v1552
  %1758 = vst.msk [vmem:[%s2 + $0x390] sm:$0xff] %vm1643, %v1553
  %1759 = vst.msk [vmem:[%s2 + $0x398] sm:$0xff] %vm1643, %v1554
  %1760 = vst.msk [vmem:[%s2 + $0x3a0] sm:$0xff] %vm1643, %v1555
  %1761 = vst.msk [vmem:[%s2 + $0x3a8] sm:$0xff] %vm1643, %v1556
  %1762 = vst.msk [vmem:[%s2 + $0x3b0] sm:$0xff] %vm1643, %v1557
  %1763 = vst.msk [vmem:[%s2 + $0x3b8] sm:$0xff] %vm1643, %v1558
  %1764 = vst.msk [vmem:[%s2 + $0x3c0] sm:$0xff] %vm1643, %v1559
  %1765 = vst.msk [vmem:[%s2 + $0x3c8] sm:$0xff] %vm1643, %v1560
  %1766 = vst.msk [vmem:[%s2 + $0x3d0] sm:$0xff] %vm1643, %v1561
  %1767 = vst.msk [vmem:[%s2 + $0x3d8] sm:$0xff] %vm1643, %v1562
  %1768 = vst.msk [vmem:[%s2 + $0x3e0] sm:$0xff] %vm1643, %v1563
  %1769 = vst.msk [vmem:[%s2 + $0x3e8] sm:$0xff] %vm1643, %v1564
  %1770 = vst.msk [vmem:[%s2 + $0x3f0] sm:$0xff] %vm1643, %v1565
  %1771 = vst.msk [vmem:[%s2 + $0x3f8] sm:$0xff] %vm1643, %v1566
  %1772 = vst.msk [vmem:[%s2 + $0x400] sm:$0xff] %vm1643, %v1567
  %1773 = vst.msk [vmem:[%s2 + $0x408] sm:$0xff] %vm1643, %v1568
  %1774 = vst.msk [vmem:[%s2 + $0x410] sm:$0xff] %vm1643, %v1569
  %1775 = vst.msk [vmem:[%s2 + $0x418] sm:$0xff] %vm1643, %v1570
  %1776 = vst.msk [vmem:[%s2 + $0x420] sm:$0xff] %vm1643, %v1571
  %1777 = vst.msk [vmem:[%s2 + $0x428] sm:$0xff] %vm1643, %v1572
  %1778 = vst.msk [vmem:[%s2 + $0x430] sm:$0xff] %vm1643, %v1573
  %1779 = vst.msk [vmem:[%s2 + $0x438] sm:$0xff] %vm1643, %v1574
  %1780 = vst.msk [vmem:[%s2 + $0x440] sm:$0xff] %vm1643, %v1575
  %1781 = vst.msk [vmem:[%s2 + $0x448] sm:$0xff] %vm1643, %v1576
  %1782 = vst.msk [vmem:[%s2 + $0x450] sm:$0xff] %vm1643, %v1577
  %1783 = vst.msk [vmem:[%s2 + $0x458] sm:$0xff] %vm1643, %v1578
  %1784 = vst.msk [vmem:[%s2 + $0x460] sm:$0xff] %vm1643, %v1579
  %1785 = vst.msk [vmem:[%s2 + $0x468] sm:$0xff] %vm1643, %v1580
  %1786 = vst.msk [vmem:[%s2 + $0x470] sm:$0xff] %vm1643, %v1581
  %1787 = vst.msk [vmem:[%s2 + $0x478] sm:$0xff] %vm1643, %v1582
  %1788 = vst.msk [vmem:[%s2 + $0x480] sm:$0xff] %vm1643, %v1583
  %1789 = vst.msk [vmem:[%s2 + $0x488] sm:$0xff] %vm1643, %v1584
  %1790 = vst.msk [vmem:[%s2 + $0x490] sm:$0xff] %vm1643, %v1585
  %1791 = vst.msk [vmem:[%s2 + $0x498] sm:$0xff] %vm1643, %v1586
  %1792 = vst.msk [vmem:[%s2 + $0x4a0] sm:$0xff] %vm1643, %v1587
  %1793 = vst.msk [vmem:[%s2 + $0x4a8] sm:$0xff] %vm1643, %v1588
  %1794 = vst.msk [vmem:[%s2 + $0x4b0] sm:$0xff] %vm1643, %v1589
  %1795 = vst.msk [vmem:[%s2 + $0x4b8] sm:$0xff] %vm1643, %v1590
  %1796 = vst.msk [vmem:[%s2 + $0x4c0] sm:$0xff] %vm1643, %v1591
  %1797 = vst.msk [vmem:[%s2 + $0x4c8] sm:$0xff] %vm1643, %v1592
  %1798 = vst.msk [vmem:[%s2 + $0x4d0] sm:$0xff] %vm1643, %v1593
  %1799 = vst.msk [vmem:[%s2 + $0x4d8] sm:$0xff] %vm1643, %v1594
  %1800 = vst.msk [vmem:[%s2 + $0x4e0] sm:$0xff] %vm1643, %v1595
  %1801 = vst.msk [vmem:[%s2 + $0x4e8] sm:$0xff] %vm1643, %v1596
  %1802 = vst.msk [vmem:[%s2 + $0x4f0] sm:$0xff] %vm1643, %v1597
  %1803 = vst.msk [vmem:[%s2 + $0x4f8] sm:$0xff] %vm1643, %v1598
  %1804 = vst.msk [vmem:[%s2 + $0x500] sm:$0xff] %vm1643, %v1599
  %1805 = vst.msk [vmem:[%s2 + $0x508] sm:$0xff] %vm1643, %v1600
  %1806 = vst.msk [vmem:[%s2 + $0x510] sm:$0xff] %vm1643, %v1601
  %1807 = vst.msk [vmem:[%s2 + $0x518] sm:$0xff] %vm1643, %v1602
  %1808 = vst.msk [vmem:[%s2 + $0x520] sm:$0xff] %vm1643, %v1603
  %1809 = vst.msk [vmem:[%s2 + $0x528] sm:$0xff] %vm1643, %v1604
  %1810 = vst.msk [vmem:[%s2 + $0x530] sm:$0xff] %vm1643, %v1605
  %1811 = vst.msk [vmem:[%s2 + $0x538] sm:$0xff] %vm1643, %v1606
  %1812 = vst.msk [vmem:[%s2 + $0x540] sm:$0xff] %vm1643, %v1607
  %1813 = vst.msk [vmem:[%s2 + $0x548] sm:$0xff] %vm1643, %v1608
  %1814 = vst.msk [vmem:[%s2 + $0x550] sm:$0xff] %vm1643, %v1609
  %1815 = vst.msk [vmem:[%s2 + $0x558] sm:$0xff] %vm1643, %v1610
  %1816 = vst.msk [vmem:[%s2 + $0x560] sm:$0xff] %vm1643, %v1611
  %1817 = vst.msk [vmem:[%s2 + $0x568] sm:$0xff] %vm1643, %v1612
  %1818 = vst.msk [vmem:[%s2 + $0x570] sm:$0xff] %vm1643, %v1613
  %1819 = vst.msk [vmem:[%s2 + $0x578] sm:$0xff] %vm1643, %v1614
  %1820 = vst.msk [vmem:[%s2 + $0x580] sm:$0xff] %vm1643, %v1615
  %1821 = vst.msk [vmem:[%s2 + $0x588] sm:$0xff] %vm1643, %v1616
  %1822 = vst.msk [vmem:[%s2 + $0x590] sm:$0xff] %vm1643, %v1617
  %1823 = vst.msk [vmem:[%s2 + $0x598] sm:$0xff] %vm1643, %v1618
  %1824 = vst.msk [vmem:[%s2 + $0x5a0] sm:$0xff] %vm1643, %v1619
  %1825 = vst.msk [vmem:[%s2 + $0x5a8] sm:$0xff] %vm1643, %v1620
  %1826 = vst.msk [vmem:[%s2 + $0x5b0] sm:$0xff] %vm1643, %v1621
  %1827 = vst.msk [vmem:[%s2 + $0x5b8] sm:$0xff] %vm1643, %v1622
  %1828 = vst.msk [vmem:[%s2 + $0x5c0] sm:$0xff] %vm1643, %v1623
  %1829 = vst.msk [vmem:[%s2 + $0x5c8] sm:$0xff] %vm1643, %v1624
  %1830 = vst.msk [vmem:[%s2 + $0x5d0] sm:$0xff] %vm1643, %v1625
  %1831 = vst.msk [vmem:[%s2 + $0x5d8] sm:$0xff] %vm1643, %v1626
  %1832 = vst.msk [vmem:[%s2 + $0x5e0] sm:$0xff] %vm1643, %v1627
  %1833 = vst.msk [vmem:[%s2 + $0x5e8] sm:$0xff] %vm1643, %v1628
  %1834 = vst.msk [vmem:[%s2 + $0x5f0] sm:$0xff] %vm1643, %v1629
  %1835 = vst.msk [vmem:[%s2 + $0x5f8] sm:$0xff] %vm1643, %v1630
  %1836 = vst.msk [vmem:[%s2 + $0x600] sm:$0xff] %vm1643, %v1631
  %1837 = vst.msk [vmem:[%s2 + $0x608] sm:$0xff] %vm1643, %v1632
  %1838 = vst.msk [vmem:[%s2 + $0x610] sm:$0xff] %vm1643, %v1633
  %1839 = vst.msk [vmem:[%s2 + $0x618] sm:$0xff] %vm1643, %v1634
  %1840 = vst.msk [vmem:[%s2 + $0x620] sm:$0xff] %vm1643, %v1635
  %1841 = vst.msk [vmem:[%s2 + $0x628] sm:$0xff] %vm1643, %v1636
  %1842 = vst.msk [vmem:[%s2 + $0x630] sm:$0xff] %vm1643, %v1637
  %1843 = vst.msk [vmem:[%s2 + $0x638] sm:$0xff] %vm1643, %v1638
  %1844 = vst.msk [vmem:[%s2 + $0x640] sm:$0xff] %vm1643, %v1639
  %1845 = vst.msk [vmem:[%s2 + $0x648] sm:$0xff] %vm1643, %v1640
  %1846 = vst.msk [vmem:[%s2 + $0x650] sm:$0xff] %vm1643, %v1641
  %1847 = vst.msk [vmem:[%s2 + $0x658] sm:$0xff] %vm1643, %v1642
  // Predicated region
  $region10: #{tpu_custom_call.1} parent=0 // pred_check
    _
  $region11: #{tpu_custom_call.1} parent=0 // pred_check_branch
    %1849 = sbr.rel (0) target = $region13
  $region12: #{tpu_custom_call.1} parent=0 // pred_region
    _
  $region13: #{tpu_custom_call.1} parent=0 // pred_fallthru
    _
  // Predicated region
  $region14: #{tpu_custom_call.1} parent=0 // pred_check
    _
  $region15: #{tpu_custom_call.1} parent=0 // pred_check_branch
    %1851 = sbr.rel (0) target = $region17
  $region16: #{tpu_custom_call.1} parent=0 // pred_region
    _
  $region17: #{tpu_custom_call.1} parent=0 // pred_fallthru
    _

</llo_original>
